<compile_context>
chip_gen: v7x
topology: tpu7x:2x2x1
jax: 0.10.0
libtpu: 0.0.40
codegen_flags: <defaults>
</compile_context>

<pallas_src>
import functools

import jax
import jax.numpy as jnp
from jax.experimental import pallas as pl
from jax.experimental.pallas import tpu as pltpu

PAD = 0   # NMTVocab.PAD


def _round_up(n, m):
    return (n + m - 1) // m * m


# ----------------------------------------------------------------------------- kernels
def input_proj_kernel(emb_ref, xcat_ref, wge_ref, wgs_ref, bgi_ref, gi_ref):
    """Fused syntax projections + ScalarMix + hoisted BiGRU input projection.

    ScalarMix weights and the syntax->enc projection are folded into wgs, so:
        gi = emb @ Wge + xcat @ Wfold + b_gi
    Two accumulated matmuls, both with the full 6H (=384) output lanes; no concat.
    """
    gi = jnp.dot(emb_ref[...], wge_ref[...], preferred_element_type=jnp.float32)
    gi = gi + jnp.dot(xcat_ref[...], wgs_ref[...], preferred_element_type=jnp.float32)
    gi = gi + bgi_ref[...]                                  # bias added in f32
    gi_ref[...] = gi.astype(gi_ref.dtype)                   # stored bf16


def bigru_kernel(lens_ref, gi_ref, whh_ref, bhh_ref, outf_ref, outb_ref, *,
                 hidden_size, seq_len):
    """Sequential bidirectional GRU over one batch block; time loop inside (unrolled).

    gi_ref  : (S, Bblk, 6H) bf16 input-gate preactivations, columns
              [r_f | r_b | z_f | z_b | n_f | n_b] (NOT pre-reversed: the backward
              columns for loop step t are taken from row S-1-t in-kernel).
    lens    : (Bblk, 1) int32 valid lengths (replaces the old inflated mask array).
    whh     : (2H, 6H) bf16 block-diagonal recurrent weights (both directions fused).
    outf    : (S, Bblk, H) f32 forward outputs, written at row t.
    outb    : (S, Bblk, H) f32 backward outputs, written at row S-1-t (already in
              original time order -> no host-side reverse).
    Packed-sequence semantics: outputs are zero at PAD; backward starts at each
    sentence's last valid token (mask keeps h at 0 until then).
    """
    H = hidden_size
    H2 = 2 * H
    S = seq_len
    bb = gi_ref.shape[1]

    whh = whh_ref[...]                                       # (2H, 6H) bf16
    bhh = bhh_ref[...]                                       # (1, 6H)  f32
    lens = lens_ref[...]                                     # (Bblk, 1) int32

    col6 = jax.lax.broadcasted_iota(jnp.int32, (bb, 6 * H), 1)
    bwd6 = (col6 // H) % 2 == 1                              # backward gate columns
    col2 = jax.lax.broadcasted_iota(jnp.int32, (bb, H2), 1)
    bwd2 = col2 >= H                                         # backward half of h

    def step(t, h):
        t_b = S - 1 - t
        # forward gates from time t, backward gates from time S-1-t (one VPU select)
        gi = jnp.where(bwd6, gi_ref[t_b], gi_ref[t])         # (Bblk, 6H) bf16
        gh = jnp.dot(h.astype(jnp.bfloat16), whh,
                     preferred_element_type=jnp.float32) + bhh
        r = jax.nn.sigmoid(gi[:, :H2] + gh[:, :H2])
        z = jax.nn.sigmoid(gi[:, H2:2 * H2] + gh[:, H2:2 * H2])
        n = jnp.tanh(gi[:, 2 * H2:] + r * gh[:, 2 * H2:])
        h_cand = (1.0 - z) * n + z * h
        tcmp = jnp.where(bwd2, t_b, t)                       # (Bblk, 2H) int32
        m = (tcmp < lens).astype(jnp.float32)                # validity mask, rebuilt cheaply
        h_new = m * h_cand + (1.0 - m) * h                   # carry through PAD
        out = m * h_new                                      # packed: 0 at PAD
        outf_ref[t] = out[:, :H].astype(outf_ref.dtype)
        outb_ref[t_b] = out[:, H:].astype(outb_ref.dtype)
        return h_new

    h0 = jnp.zeros((bb, H2), jnp.float32)                    # nn.GRU h0 = 0
    unroll = True if S <= 32 else 4
    jax.lax.fori_loop(0, S, step, h0, unroll=unroll)


# ----------------------------------------------------------------------------- weight prep
def prepare_encoder_params(params):
    """Pre-fuse / pre-transpose / bf16-cast weights once, outside the hot path."""
    H = params["gru_w_hh_f"].shape[1]
    E = params["embedding"].shape[1]

    # ScalarMix folded into one stacked bias-free syntax projection: (Dsyn, E), f32.
    mix = jax.nn.softmax(params["mix_scalars"]) * params["mix_gamma"]
    w_list = [params["w_emb"]] + list(params["w_lstm"]) + [params["w_dep"], params["w_head"]]
    w_syn = jnp.concatenate([mix[k] * w_list[k].T for k in range(len(w_list))], axis=0)

    def gates(w):   # (3H, ...) or (3H,) -> r, z, n   (PyTorch GRU gate order)
        return w[:H], w[H:2 * H], w[2 * H:]

    # Input->gate weights, both directions, gate-interleaved columns: (2E, 6H), f32.
    rif, zif, nif = gates(params["gru_w_ih_f"])
    rib, zib, nib = gates(params["gru_w_ih_b"])
    w_gi = jnp.concatenate([rif.T, rib.T, zif.T, zib.T, nif.T, nib.T], axis=1)

    # Fold the syntax projection into the bottom half of W_gi (f32 fold, then bf16).
    w_gi_emb = w_gi[:E]                                       # (E, 6H)  multiplies emb
    w_gi_fold = w_syn @ w_gi[E:]                              # (Dsyn, 6H) multiplies xcat

    rf, zf, nf = gates(params["gru_b_ih_f"])
    rb, zb, nb = gates(params["gru_b_ih_b"])
    b_gi = jnp.concatenate([rf, rb, zf, zb, nf, nb])[None, :]             # (1, 6H)

    # Recurrent weights fused into one block-diagonal (2H, 6H) matrix.
    rhf, zhf, nhf = gates(params["gru_w_hh_f"])
    rhb, zhb, nhb = gates(params["gru_w_hh_b"])
    Z = jnp.zeros((H, H), jnp.float32)
    top = jnp.concatenate([rhf.T, Z, zhf.T, Z, nhf.T, Z], axis=1)
    bot = jnp.concatenate([Z, rhb.T, Z, zhb.T, Z, nhb.T], axis=1)
    w_hh = jnp.concatenate([top, bot], axis=0)                            # (2H, 6H)

    rf, zf, nf = gates(params["gru_b_hh_f"])
    rb, zb, nb = gates(params["gru_b_hh_b"])
    b_hh = jnp.concatenate([rf, rb, zf, zb, nf, nb])[None, :]             # (1, 6H)

    return {
        "emb_table": params["embedding"].astype(jnp.bfloat16),
        "w_gi_emb": w_gi_emb.astype(jnp.bfloat16),
        "w_gi_syn": w_gi_fold.astype(jnp.bfloat16),
        "b_gi": b_gi.astype(jnp.float32),
        "w_hh": w_hh.astype(jnp.bfloat16),
        "b_hh": b_hh.astype(jnp.float32),
    }


# ----------------------------------------------------------------------------- tiling helpers
def _pick_batch_block(B, S, H, budget_bytes=24 << 20):
    """Largest batch block (multiple of 8, divisor of B) whose kernel-2 footprint fits
    the VMEM budget (conservative for v7x's 64 MiB). Keeps grid >= 2 blocks for
    megacore sharding once each half still fills the MXU rows."""
    def footprint(bb):
        gi = 2 * S * bb * 6 * H * 2           # bf16 gi, double-buffered
        outs = 2 * 2 * S * bb * H * 4         # two f32 outputs, double-buffered
        wts = (2 * H) * (6 * H) * 2 + 2 * 6 * H * 4
        return gi + outs + wts + 8 * bb
    cands = [bb for bb in range(8, B + 1, 8) if B % bb == 0 and footprint(bb) <= budget_bytes]
    if not cands:
        return B                               # tiny / ragged batch: full-extent block
    bb = max(cands)
    if bb == B and (B // 2) in cands and (B // 2) >= 128:
        bb = B // 2                            # use both v7x TensorCores
    return bb


# ----------------------------------------------------------------------------- wrapper
def encoder_forward(params, fused, x, synxs, lengths):
    B, S = x.shape
    E = params["embedding"].shape[1]
    H = params["gru_w_hh_f"].shape[1]
    H6 = 6 * H

    # ---- plain-JAX glue (time-major from the start, bf16 inputs) ------------
    # TODO(synk): Embeddings dropout=0.0 and add_position_embedding=False -> plain lookup.
    emb = jnp.take(fused["emb_table"], x.T, axis=0)                       # (S, B, E) bf16
    xcat = jnp.concatenate([s.transpose(1, 0, 2) for s in synxs],
                           axis=-1).astype(jnp.bfloat16)                  # (S, B, Dsyn) bf16
    Dsyn = xcat.shape[-1]

    N = S * B
    rt = min(512, _round_up(N, 8))
    Np = _round_up(N, rt)
    emb2 = emb.reshape(N, E)
    xcat2 = xcat.reshape(N, Dsyn)
    if Np != N:
        emb2 = jnp.pad(emb2, ((0, Np - N), (0, 0)))
        xcat2 = jnp.pad(xcat2, ((0, Np - N), (0, 0)))

    # ---- kernel 1: fused projections (row-tiled, pipelined, parallel) -------
    gi2 = pl.pallas_call(
        input_proj_kernel,
        grid=(Np // rt,),
        in_specs=[
            pl.BlockSpec((rt, E), lambda i: (i, 0)),
            pl.BlockSpec((rt, Dsyn), lambda i: (i, 0)),
            pl.BlockSpec((E, H6), lambda i: (0, 0)),
            pl.BlockSpec((Dsyn, H6), lambda i: (0, 0)),
            pl.BlockSpec((1, H6), lambda i: (0, 0)),
        ],
        out_specs=pl.BlockSpec((rt, H6), lambda i: (i, 0)),
        out_shape=jax.ShapeDtypeStruct((Np, H6), jnp.bfloat16),
        compiler_params=pltpu.CompilerParams(
            dimension_semantics=("parallel",),
            vmem_limit_bytes=32 * 1024 * 1024),
    )(emb2, xcat2, fused["w_gi_emb"], fused["w_gi_syn"], fused["b_gi"])

    gi = gi2[:N].reshape(S, B, H6)                                        # free reshape
    lens2 = lengths.astype(jnp.int32).reshape(B, 1)

    # ---- kernel 2: fused bidirectional recurrence (batch-parallel grid) -----
    b_blk = _pick_batch_block(B, S, H)
    kern = functools.partial(bigru_kernel, hidden_size=H, seq_len=S)
    cost = pl.CostEstimate(
        flops=int(2 * (2 * H) * (6 * H) * B * S + 12 * B * S * 6 * H),
        transcendentals=int(6 * H * B * S),
        bytes_accessed=int(N * H6 * 2 + 2 * N * H * 4 + B * 4 + (2 * H) * H6 * 2),
    )
    out_f, out_b = pl.pallas_call(
        kern,
        grid=(B // b_blk,),
        in_specs=[
            pl.BlockSpec((b_blk, 1), lambda i: (i, 0)),
            pl.BlockSpec((S, b_blk, H6), lambda i: (0, i, 0)),
            pl.BlockSpec((2 * H, H6), lambda i: (0, 0)),
            pl.BlockSpec((1, H6), lambda i: (0, 0)),
        ],
        out_specs=(pl.BlockSpec((S, b_blk, H), lambda i: (0, i, 0)),
                   pl.BlockSpec((S, b_blk, H), lambda i: (0, i, 0))),
        out_shape=(jax.ShapeDtypeStruct((S, B, H), jnp.float32),
                   jax.ShapeDtypeStruct((S, B, H), jnp.float32)),
        compiler_params=pltpu.CompilerParams(
            dimension_semantics=("parallel",),
            vmem_limit_bytes=32 * 1024 * 1024),
        cost_estimate=cost,
    )(lens2, gi, fused["w_hh"], fused["b_hh"])

    # single fused pass: concat halves + batch-first transpose
    ctx = jnp.concatenate([out_f, out_b], axis=-1).transpose(1, 0, 2)     # (B, S, 2H)
    x_mask = x == PAD
    return ctx, x_mask


# ----------------------------------------------------------------------------- pure-JAX reference
def encoder_forward_ref(params, x, synxs, lengths):
    H = params["gru_w_hh_f"].shape[1]
    B, S = x.shape

    emb = jnp.take(params["embedding"], x, axis=0)
    projs = [synxs[0] @ params["w_emb"].T]
    for l, w in enumerate(params["w_lstm"]):
        projs.append(synxs[1 + l] @ w.T)
    projs.append(synxs[-2] @ params["w_dep"].T)
    projs.append(synxs[-1] @ params["w_head"].T)
    mix = jax.nn.softmax(params["mix_scalars"])
    syn = params["mix_gamma"] * sum(mix[k] * projs[k] for k in range(len(projs)))
    enc = jnp.concatenate([emb, syn], axis=-1)                            # (B, S, 2E)

    def gru_step(h, xt, wih, whh, bih, bhh):
        gi = xt @ wih.T + bih
        gh = h @ whh.T + bhh
        r = jax.nn.sigmoid(gi[:, :H] + gh[:, :H])
        z = jax.nn.sigmoid(gi[:, H:2 * H] + gh[:, H:2 * H])
        n = jnp.tanh(gi[:, 2 * H:] + r * gh[:, 2 * H:])
        return (1.0 - z) * n + z * h

    valid = (jnp.arange(S)[None, :] < lengths[:, None]).astype(jnp.float32)
    h = jnp.zeros((B, H), jnp.float32)
    outs_f = []
    for t in range(S):
        hn = gru_step(h, enc[:, t], params["gru_w_ih_f"], params["gru_w_hh_f"],
                      params["gru_b_ih_f"], params["gru_b_hh_f"])
        m = valid[:, t:t + 1]
        h = m * hn + (1.0 - m) * h
        outs_f.append(m * h)
    h = jnp.zeros((B, H), jnp.float32)
    outs_b = [None] * S
    for t in range(S - 1, -1, -1):
        hn = gru_step(h, enc[:, t], params["gru_w_ih_b"], params["gru_w_hh_b"],
                      params["gru_b_ih_b"], params["gru_b_hh_b"])
        m = valid[:, t:t + 1]
        h = m * hn + (1.0 - m) * h
        outs_b[t] = m * h
    ctx = jnp.concatenate([jnp.stack(outs_f, 1), jnp.stack(outs_b, 1)], axis=-1)
    return ctx, x == PAD


# ----------------------------------------------------------------------------- params
def init_params(key, *, n_words, input_size, hidden_size, word_dims,
                lstm_hiddens, lstm_layers, mlp_arc_size, mlp_rel_size):
    E, H = input_size, hidden_size
    parser_dim = 2 * lstm_hiddens
    parser_mlp = mlp_arc_size + mlp_rel_size
    ks = iter(jax.random.split(key, 64))

    def w(shape, scale=0.08):
        return scale * jax.random.normal(next(ks), shape, jnp.float32)

    emb_tbl = 0.1 * jax.random.normal(next(ks), (n_words, E), jnp.float32)
    emb_tbl = emb_tbl.at[PAD].set(0.0)        # nn.Embedding(padding_idx=PAD)

    return {
        "embedding": emb_tbl,
        "w_emb": w((E, word_dims)),                                   # transformer_emb
        "w_lstm": [w((E, parser_dim)) for _ in range(lstm_layers)],   # transformer_lstm[l]
        "w_dep": w((E, parser_mlp)),                                  # transformer_dep
        "w_head": w((E, parser_mlp)),                                 # transformer_head
        "mix_scalars": w((3 + lstm_layers,), 0.5),                    # ScalarMix scalars
        "mix_gamma": jnp.float32(1.0),                                # ScalarMix gamma
        "gru_w_ih_f": w((3 * H, 2 * E)), "gru_w_hh_f": w((3 * H, H)),
        "gru_b_ih_f": w((3 * H,), 0.01), "gru_b_hh_f": w((3 * H,), 0.01),
        "gru_w_ih_b": w((3 * H, 2 * E)), "gru_w_hh_b": w((3 * H, H)),
        "gru_b_ih_b": w((3 * H,), 0.01), "gru_b_hh_b": w((3 * H,), 0.01),
    }


# ----------------------------------------------------------------------------- main
if __name__ == "__main__":
    n_words, E, H = 64, 64, 64
    B, S = 8, 16
    word_dims, lstm_hiddens, lstm_layers = 32, 32, 2
    mlp_arc_size, mlp_rel_size = 48, 16
    parser_dim = 2 * lstm_hiddens
    parser_mlp = mlp_arc_size + mlp_rel_size

    key = jax.random.PRNGKey(0)
    kp, kx, kl, *ksyn = jax.random.split(key, 4 + 3 + lstm_layers)

    params = init_params(kp, n_words=n_words, input_size=E, hidden_size=H,
                         word_dims=word_dims, lstm_hiddens=lstm_hiddens,
                         lstm_layers=lstm_layers, mlp_arc_size=mlp_arc_size,
                         mlp_rel_size=mlp_rel_size)

    lengths = jnp.array([16, 16, 13, 16, 10, 16, 15, 7], dtype=jnp.int32)
    tokens = jax.random.randint(kx, (B, S), 4, n_words, dtype=jnp.int32)
    pad_pos = jnp.arange(S)[None, :] >= lengths[:, None]
    x = jnp.where(pad_pos, PAD, tokens)

    synxs = [jax.random.normal(ksyn[0], (B, S, word_dims), jnp.float32)]
    for l in range(lstm_layers):
        synxs.append(jax.random.normal(ksyn[1 + l], (B, S, parser_dim), jnp.float32))
    synxs.append(jax.random.normal(ksyn[1 + lstm_layers], (B, S, parser_mlp), jnp.float32))
    synxs.append(jax.random.normal(ksyn[2 + lstm_layers], (B, S, parser_mlp), jnp.float32))

    fused = prepare_encoder_params(params)
    ctx, x_mask = encoder_forward(params, fused, x, synxs, lengths)
    ctx = jax.block_until_ready(ctx)

    ref_ctx, ref_mask = encoder_forward_ref(params, x, synxs, lengths)
    assert ctx.shape == (B, S, 2 * H) and x_mask.shape == (B, S)
    assert bool(jnp.all(x_mask == ref_mask))
    max_err = float(jnp.max(jnp.abs(ctx - ref_ctx)))
    assert jnp.allclose(ctx, ref_ctx, atol=4e-2, rtol=4e-2), f"max abs err {max_err}"

    print("KERNEL_OK")
</pallas_src>

<mosaic_0001>
module attributes {stable_mosaic.version = 11 : i64} {
  func.func @input_proj_kernel(%arg0: i32, %arg1: memref<128x64xbf16, #tpu.memory_space<vmem>>, %arg2: memref<128x288xbf16, #tpu.memory_space<vmem>>, %arg3: memref<64x384xbf16, #tpu.memory_space<vmem>>, %arg4: memref<288x384xbf16, #tpu.memory_space<vmem>>, %arg5: memref<1x384xf32, #tpu.memory_space<vmem>>, %arg6: memref<128x384xbf16, #tpu.memory_space<vmem>>) attributes {dimension_semantics = [#tpu.dimension_semantics<parallel>], iteration_bounds = array<i64: 1>, scalar_prefetch = 0 : i64, scratch_operands = 0 : i64, tpu.core_type = #tpu.core_type<tc>, window_params = [{transform_indices = @transform_0, window_bounds = array<i64: 128, 64>}, {transform_indices = @transform_1, window_bounds = array<i64: 128, 288>}, {pipeline_mode = #tpu.pipeline_mode<synchronous>, transform_indices = @transform_2, window_bounds = array<i64: 64, 384>}, {pipeline_mode = #tpu.pipeline_mode<synchronous>, transform_indices = @transform_3, window_bounds = array<i64: 288, 384>}, {pipeline_mode = #tpu.pipeline_mode<synchronous>, transform_indices = @transform_4, window_bounds = array<i64: 1, 384>}, {transform_indices = @transform_5, window_bounds = array<i64: 128, 384>}]} {
    %c0 = arith.constant 0 : index
    %c0_0 = arith.constant 0 : index
    %0 = vector.load %arg1[%c0, %c0_0] : memref<128x64xbf16, #tpu.memory_space<vmem>>, vector<128x64xbf16>
    %c0_1 = arith.constant 0 : index
    %c0_2 = arith.constant 0 : index
    %1 = vector.load %arg3[%c0_1, %c0_2] : memref<64x384xbf16, #tpu.memory_space<vmem>>, vector<64x384xbf16>
    %cst = arith.constant dense<0.000000e+00> : vector<128x384xf32>
    %2 = tpu.matmul %0, %1, %cst {dimension_numbers = #tpu.dot_dimension_numbers<[1], [0], [0], [1], [0, 0, 1, 1], [], []>} : vector<128x64xbf16>, vector<64x384xbf16>, vector<128x384xf32> -> vector<128x384xf32>
    %c0_3 = arith.constant 0 : index
    %c0_4 = arith.constant 0 : index
    %3 = vector.load %arg2[%c0_3, %c0_4] : memref<128x288xbf16, #tpu.memory_space<vmem>>, vector<128x288xbf16>
    %c0_5 = arith.constant 0 : index
    %c0_6 = arith.constant 0 : index
    %4 = vector.load %arg4[%c0_5, %c0_6] : memref<288x384xbf16, #tpu.memory_space<vmem>>, vector<288x384xbf16>
    %cst_7 = arith.constant dense<0.000000e+00> : vector<128x384xf32>
    %5 = tpu.matmul %3, %4, %cst_7 {dimension_numbers = #tpu.dot_dimension_numbers<[1], [0], [0], [1], [0, 0, 1, 1], [], []>} : vector<128x288xbf16>, vector<288x384xbf16>, vector<128x384xf32> -> vector<128x384xf32>
    %6 = arith.addf %2, %5 : vector<128x384xf32>
    %c0_8 = arith.constant 0 : index
    %c0_9 = arith.constant 0 : index
    %7 = vector.load %arg5[%c0_8, %c0_9] : memref<1x384xf32, #tpu.memory_space<vmem>>, vector<1x384xf32>
    %8 = vector.broadcast %7 : vector<1x384xf32> to vector<128x384xf32>
    %9 = arith.addf %6, %8 : vector<128x384xf32>
    %10 = arith.truncf %9 : vector<128x384xf32> to vector<128x384xbf16>
    %c0_10 = arith.constant 0 : index
    %c0_11 = arith.constant 0 : index
    %11 = vector.load %arg6[%c0_10, %c0_11] : memref<128x384xbf16, #tpu.memory_space<vmem>>, vector<128x384xbf16>
    tpu.vector_store %arg6[%c0_10, %c0_11], %10 {strides = array<i32>} : memref<128x384xbf16, #tpu.memory_space<vmem>>, vector<128x384xbf16>,
    return
  }
  func.func @transform_0(%arg0: i32) -> (i32, i32) {
    %c0_i32 = arith.constant 0 : i32
    %c0_i32_0 = arith.constant 0 : i32
    return %arg0, %c0_i32 : i32, i32
  }
  func.func @transform_1(%arg0: i32) -> (i32, i32) {
    %c0_i32 = arith.constant 0 : i32
    %c0_i32_0 = arith.constant 0 : i32
    return %arg0, %c0_i32 : i32, i32
  }
  func.func @transform_2(%arg0: i32) -> (i32, i32) {
    %c0_i32 = arith.constant 0 : i32
    %c0_i32_0 = arith.constant 0 : i32
    %c0_i32_1 = arith.constant 0 : i32
    return %c0_i32, %c0_i32_0 : i32, i32
  }
  func.func @transform_3(%arg0: i32) -> (i32, i32) {
    %c0_i32 = arith.constant 0 : i32
    %c0_i32_0 = arith.constant 0 : i32
    %c0_i32_1 = arith.constant 0 : i32
    return %c0_i32, %c0_i32_0 : i32, i32
  }
  func.func @transform_4(%arg0: i32) -> (i32, i32) {
    %c0_i32 = arith.constant 0 : i32
    %c0_i32_0 = arith.constant 0 : i32
    %c0_i32_1 = arith.constant 0 : i32
    return %c0_i32, %c0_i32_0 : i32, i32
  }
  func.func @transform_5(%arg0: i32) -> (i32, i32) {
    %c0_i32 = arith.constant 0 : i32
    %c0_i32_0 = arith.constant 0 : i32
    return %arg0, %c0_i32 : i32, i32
  }
}

</mosaic_0001>

<llo_original>
// kernel: tpu_custom_call.1
$region0: #{tpu_custom_call.1}
  #allocation0 [shape = 'u32[]', space=smem, size = 0x4, offset = 0x4, fixed_abs, tag = 'smem constant byte address 0x4 - core index']
  #allocation1 [shape = 'u32[144,128]{1,0:T(1,128)}', space=vmem, size = 0x12000, scoped, tag = 'internal scratch']
  %s0 = inlined_call_operand.vmem [shape: bf16[128,64], index: 0, kind: input, shape index: {}]
  %s1 = inlined_call_operand.vmem [shape: bf16[128,288], index: 1, kind: input, shape index: {}]
  %s2 = inlined_call_operand.hbm [shape: bf16[64,384], index: 2, kind: input, shape index: {}]
  %s3 = inlined_call_operand.vmem [shape: bf16[288,384], index: 3, kind: input, shape index: {}]
  %s4 = inlined_call_operand.vmem [shape: f32[1,384], index: 4, kind: input, shape index: {}]
  %s5 = inlined_call_operand.hbm [shape: bf16[128,384], index: 5, kind: output, shape index: {}]
  %s6 = sld [smem:[#allocation0]]
  $region34: #{tpu_custom_call.1} parent=0
    _
  %s8 = ssub.s32 1, %s6
  %s9 = scalar_select 0, %s8, %s6
  $region1: #{tpu_custom_call.1} parent=0
    #allocation2 [shape = 'u8[49152]{0}', space=vmem, size = 0xc000, scoped, tag = 'input window, operand 2, single buffered']
    #allocation3 [shape = 's32[1]{0}', space=sflag, size = 0x4, scoped, tag = 'scoped memory for tpu_custom_call.1']
    #allocation4 [shape = 's32[1]{0}', space=sflag, size = 0x4, scoped, tag = 'scoped memory for tpu_custom_call.1']
    #allocation5 [shape = 'u8[98304]{0}', space=vmem, size = 0x18000, scoped, tag = 'output window, operand 0, single buffered']
    %10 = vsyncpa [#allocation3], 0
    %11 = vsyncpa [#allocation4], 0
    // Predicated region
    $region2: #{tpu_custom_call.1} parent=1 // pred_check
      _
    $region3: #{tpu_custom_call.1} parent=1 // pred_check_branch
      %13 = sbr.rel (0) target = $region5
    $region4: #{tpu_custom_call.1} parent=1 // pred_region
      _
    $region5: #{tpu_custom_call.1} parent=1 // pred_fallthru
      _
    // Predicated region
    $region6: #{tpu_custom_call.1} parent=1 // pred_check
      _
    $region7: #{tpu_custom_call.1} parent=1 // pred_check_branch
      %15 = sbr.rel (0) target = $region9
    $region8: #{tpu_custom_call.1} parent=1 // pred_region
      _
    $region9: #{tpu_custom_call.1} parent=1 // pred_fallthru
      _
    // Predicated region
    $region10: #{tpu_custom_call.1} parent=1 // pred_check
      _
    $region11: #{tpu_custom_call.1} parent=1 // pred_check_branch
      %17 = sbr.rel (0) target = $region13
    $region12: #{tpu_custom_call.1} parent=1 // pred_region
      %s19 = ssub.s32 1536, 1536
      %20 = vsyncadd [#allocation3], %s19
      %s21 = sshll.u32 [#allocation2], 4
      %s22 = int_to_ptr.vmem [resolvable:$true] %s21
      %27 = dma.hbm_to_vmem [thread:$0]  %s2, 1536, %s22, [#allocation3], 192, 192, 12
    $region13: #{tpu_custom_call.1} parent=1 // pred_fallthru
      _
    // Predicated region
    $region14: #{tpu_custom_call.1} parent=1 // pred_check
      _
    $region15: #{tpu_custom_call.1} parent=1 // pred_check_branch
      %29 = sbr.rel (0) target = $region17
    $region16: #{tpu_custom_call.1} parent=1 // pred_region
      _
    $region17: #{tpu_custom_call.1} parent=1 // pred_fallthru
      _
    // Predicated region
    $region18: #{tpu_custom_call.1} parent=1 // pred_check
      _
    $region19: #{tpu_custom_call.1} parent=1 // pred_check_branch
      %31 = sbr.rel (0) target = $region21
    $region20: #{tpu_custom_call.1} parent=1 // pred_region
      _
    $region21: #{tpu_custom_call.1} parent=1 // pred_fallthru
      _
    // Predicated region
    $region22: #{tpu_custom_call.1} parent=1 // pred_check
      _
    $region23: #{tpu_custom_call.1} parent=1 // pred_check_branch
      %33 = sbr.rel (0) target = $region25
    $region24: #{tpu_custom_call.1} parent=1 // pred_region
      %34 = dma.done [#allocation3], 1536
    $region25: #{tpu_custom_call.1} parent=1 // pred_fallthru
      _
    %v36 = vld [vmem:[%s0] sm:$0xf]
    %v37 = vld [vmem:[%s0 + $0x4] sm:$0xf]
    %v38 = vld [vmem:[%s0 + $0x8] sm:$0xf]
    %v39 = vld [vmem:[%s0 + $0xc] sm:$0xf]
    %v40 = vld [vmem:[%s0 + $0x10] sm:$0xf]
    %v41 = vld [vmem:[%s0 + $0x14] sm:$0xf]
    %v42 = vld [vmem:[%s0 + $0x18] sm:$0xf]
    %v43 = vld [vmem:[%s0 + $0x1c] sm:$0xf]
    %v44 = vld [vmem:[%s0 + $0x20] sm:$0xf]
    %v45 = vld [vmem:[%s0 + $0x24] sm:$0xf]
    %v46 = vld [vmem:[%s0 + $0x28] sm:$0xf]
    %v47 = vld [vmem:[%s0 + $0x2c] sm:$0xf]
    %v48 = vld [vmem:[%s0 + $0x30] sm:$0xf]
    %v49 = vld [vmem:[%s0 + $0x34] sm:$0xf]
    %v50 = vld [vmem:[%s0 + $0x38] sm:$0xf]
    %v51 = vld [vmem:[%s0 + $0x3c] sm:$0xf]
    %v52 = vld [vmem:[#allocation2] sm:$0xff]
    %v53 = vld [vmem:[#allocation2 + $0x8] sm:$0xf]
    %v54 = vld [vmem:[#allocation2 + $0xc] sm:$0xff]
    %v55 = vld [vmem:[#allocation2 + $0x14] sm:$0xf]
    %v56 = vld [vmem:[#allocation2 + $0x18] sm:$0xff]
    %v57 = vld [vmem:[#allocation2 + $0x20] sm:$0xf]
    %v58 = vld [vmem:[#allocation2 + $0x24] sm:$0xff]
    %v59 = vld [vmem:[#allocation2 + $0x2c] sm:$0xf]
    %v60 = vld [vmem:[#allocation2 + $0x30] sm:$0xff]
    %v61 = vld [vmem:[#allocation2 + $0x38] sm:$0xf]
    %v62 = vld [vmem:[#allocation2 + $0x3c] sm:$0xff]
    %v63 = vld [vmem:[#allocation2 + $0x44] sm:$0xf]
    %v64 = vld [vmem:[#allocation2 + $0x48] sm:$0xff]
    %v65 = vld [vmem:[#allocation2 + $0x50] sm:$0xf]
    %v66 = vld [vmem:[#allocation2 + $0x54] sm:$0xff]
    %v67 = vld [vmem:[#allocation2 + $0x5c] sm:$0xf]
    %v68 = vld [vmem:[%s1] sm:$0xff]
    %v69 = vld [vmem:[%s1 + $0x8] sm:$0xf]
    %v70 = vld [vmem:[%s1 + $0xc] sm:$0xff]
    %v71 = vld [vmem:[%s1 + $0x14] sm:$0xf]
    %v72 = vld [vmem:[%s1 + $0x18] sm:$0xff]
    %v73 = vld [vmem:[%s1 + $0x20] sm:$0xf]
    %v74 = vld [vmem:[%s1 + $0x24] sm:$0xff]
    %v75 = vld [vmem:[%s1 + $0x2c] sm:$0xf]
    %v76 = vld [vmem:[%s1 + $0x30] sm:$0xff]
    %v77 = vld [vmem:[%s1 + $0x38] sm:$0xf]
    %v78 = vld [vmem:[%s1 + $0x3c] sm:$0xff]
    %v79 = vld [vmem:[%s1 + $0x44] sm:$0xf]
    %v80 = vld [vmem:[%s1 + $0x48] sm:$0xff]
    %v81 = vld [vmem:[%s1 + $0x50] sm:$0xf]
    %v82 = vld [vmem:[%s1 + $0x54] sm:$0xff]
    %v83 = vld [vmem:[%s1 + $0x5c] sm:$0xf]
    %v84 = vld [vmem:[%s1 + $0x60] sm:$0xff]
    %v85 = vld [vmem:[%s1 + $0x68] sm:$0xf]
    %v86 = vld [vmem:[%s1 + $0x6c] sm:$0xff]
    %v87 = vld [vmem:[%s1 + $0x74] sm:$0xf]
    %v88 = vld [vmem:[%s1 + $0x78] sm:$0xff]
    %v89 = vld [vmem:[%s1 + $0x80] sm:$0xf]
    %v90 = vld [vmem:[%s1 + $0x84] sm:$0xff]
    %v91 = vld [vmem:[%s1 + $0x8c] sm:$0xf]
    %v92 = vld [vmem:[%s1 + $0x90] sm:$0xff]
    %v93 = vld [vmem:[%s1 + $0x98] sm:$0xf]
    %v94 = vld [vmem:[%s1 + $0x9c] sm:$0xff]
    %v95 = vld [vmem:[%s1 + $0xa4] sm:$0xf]
    %v96 = vld [vmem:[%s1 + $0xa8] sm:$0xff]
    %v97 = vld [vmem:[%s1 + $0xb0] sm:$0xf]
    %v98 = vld [vmem:[%s1 + $0xb4] sm:$0xff]
    %v99 = vld [vmem:[%s1 + $0xbc] sm:$0xf]
    %v100 = vld [vmem:[%s3] sm:$0xff]
    %v101 = vld [vmem:[%s3 + $0x8] sm:$0xf]
    %v102 = vld [vmem:[%s3 + $0xc] sm:$0xff]
    %v103 = vld [vmem:[%s3 + $0x14] sm:$0xf]
    %v104 = vld [vmem:[%s3 + $0x18] sm:$0xff]
    %v105 = vld [vmem:[%s3 + $0x20] sm:$0xf]
    %v106 = vld [vmem:[%s3 + $0x24] sm:$0xff]
    %v107 = vld [vmem:[%s3 + $0x2c] sm:$0xf]
    %v108 = vld [vmem:[%s3 + $0x30] sm:$0xff]
    %v109 = vld [vmem:[%s3 + $0x38] sm:$0xf]
    %v110 = vld [vmem:[%s3 + $0x3c] sm:$0xff]
    %v111 = vld [vmem:[%s3 + $0x44] sm:$0xf]
    %v112 = vld [vmem:[%s3 + $0x48] sm:$0xff]
    %v113 = vld [vmem:[%s3 + $0x50] sm:$0xf]
    %v114 = vld [vmem:[%s3 + $0x54] sm:$0xff]
    %v115 = vld [vmem:[%s3 + $0x5c] sm:$0xf]
    %v116 = vld [vmem:[%s3 + $0x60] sm:$0xff]
    %v117 = vld [vmem:[%s3 + $0x68] sm:$0xf]
    %v118 = vld [vmem:[%s3 + $0x6c] sm:$0xff]
    %v119 = vld [vmem:[%s3 + $0x74] sm:$0xf]
    %v120 = vld [vmem:[%s3 + $0x78] sm:$0xff]
    %v121 = vld [vmem:[%s3 + $0x80] sm:$0xf]
    %v122 = vld [vmem:[%s3 + $0x84] sm:$0xff]
    %v123 = vld [vmem:[%s3 + $0x8c] sm:$0xf]
    %v124 = vld [vmem:[%s3 + $0x90] sm:$0xff]
    %v125 = vld [vmem:[%s3 + $0x98] sm:$0xf]
    %v126 = vld [vmem:[%s3 + $0x9c] sm:$0xff]
    %v127 = vld [vmem:[%s3 + $0xa4] sm:$0xf]
    %v128 = vld [vmem:[%s3 + $0xa8] sm:$0xff]
    %v129 = vld [vmem:[%s3 + $0xb0] sm:$0xf]
    %v130 = vld [vmem:[%s3 + $0xb4] sm:$0xff]
    %v131 = vld [vmem:[%s3 + $0xbc] sm:$0xf]
    %v132 = vld [vmem:[%s3 + $0xc0] sm:$0xff]
    %v133 = vld [vmem:[%s3 + $0xc8] sm:$0xf]
    %v134 = vld [vmem:[%s3 + $0xcc] sm:$0xff]
    %v135 = vld [vmem:[%s3 + $0xd4] sm:$0xf]
    %v136 = vld [vmem:[%s3 + $0xd8] sm:$0xff]
    %v137 = vld [vmem:[%s3 + $0xe0] sm:$0xf]
    %v138 = vld [vmem:[%s3 + $0xe4] sm:$0xff]
    %v139 = vld [vmem:[%s3 + $0xec] sm:$0xf]
    %v140 = vld [vmem:[%s3 + $0xf0] sm:$0xff]
    %v141 = vld [vmem:[%s3 + $0xf8] sm:$0xf]
    %v142 = vld [vmem:[%s3 + $0xfc] sm:$0xff]
    %v143 = vld [vmem:[%s3 + $0x104] sm:$0xf]
    %v144 = vld [vmem:[%s3 + $0x108] sm:$0xff]
    %v145 = vld [vmem:[%s3 + $0x110] sm:$0xf]
    %v146 = vld [vmem:[%s3 + $0x114] sm:$0xff]
    %v147 = vld [vmem:[%s3 + $0x11c] sm:$0xf]
    %v148 = vld [vmem:[%s3 + $0x120] sm:$0xff]
    %v149 = vld [vmem:[%s3 + $0x128] sm:$0xf]
    %v150 = vld [vmem:[%s3 + $0x12c] sm:$0xff]
    %v151 = vld [vmem:[%s3 + $0x134] sm:$0xf]
    %v152 = vld [vmem:[%s3 + $0x138] sm:$0xff]
    %v153 = vld [vmem:[%s3 + $0x140] sm:$0xf]
    %v154 = vld [vmem:[%s3 + $0x144] sm:$0xff]
    %v155 = vld [vmem:[%s3 + $0x14c] sm:$0xf]
    %v156 = vld [vmem:[%s3 + $0x150] sm:$0xff]
    %v157 = vld [vmem:[%s3 + $0x158] sm:$0xf]
    %v158 = vld [vmem:[%s3 + $0x15c] sm:$0xff]
    %v159 = vld [vmem:[%s3 + $0x164] sm:$0xf]
    %v160 = vld [vmem:[%s3 + $0x168] sm:$0xff]
    %v161 = vld [vmem:[%s3 + $0x170] sm:$0xf]
    %v162 = vld [vmem:[%s3 + $0x174] sm:$0xff]
    %v163 = vld [vmem:[%s3 + $0x17c] sm:$0xf]
    %v164 = vld [vmem:[%s3 + $0x180] sm:$0xff]
    %v165 = vld [vmem:[%s3 + $0x188] sm:$0xf]
    %v166 = vld [vmem:[%s3 + $0x18c] sm:$0xff]
    %v167 = vld [vmem:[%s3 + $0x194] sm:$0xf]
    %v168 = vld [vmem:[%s3 + $0x198] sm:$0xff]
    %v169 = vld [vmem:[%s3 + $0x1a0] sm:$0xf]
    %v170 = vld [vmem:[%s3 + $0x1a4] sm:$0xff]
    %v171 = vld [vmem:[%s3 + $0x1ac] sm:$0xf]
    %v204 = vunpack.c.l.b16 %v68
    %v205 = vunpack.c.h.b16 %v68
    %v206 = vunpack.c.l.b16 %v69
    %v207 = vunpack.c.l.b16 %v70
    %v208 = vunpack.c.h.b16 %v70
    %v209 = vunpack.c.l.b16 %v71
    %v210 = vunpack.c.l.b16 %v72
    %v211 = vunpack.c.h.b16 %v72
    %v212 = vunpack.c.l.b16 %v73
    %v213 = vunpack.c.l.b16 %v74
    %v214 = vunpack.c.h.b16 %v74
    %v215 = vunpack.c.l.b16 %v75
    %v216 = vunpack.c.l.b16 %v76
    %v217 = vunpack.c.h.b16 %v76
    %v218 = vunpack.c.l.b16 %v77
    %v219 = vunpack.c.l.b16 %v78
    %v220 = vunpack.c.h.b16 %v78
    %v221 = vunpack.c.l.b16 %v79
    %v222 = vunpack.c.l.b16 %v80
    %v223 = vunpack.c.h.b16 %v80
    %v224 = vunpack.c.l.b16 %v81
    %v225 = vunpack.c.l.b16 %v82
    %v226 = vunpack.c.h.b16 %v82
    %v227 = vunpack.c.l.b16 %v83
    %v228 = vunpack.c.l.b16 %v84
    %v229 = vunpack.c.h.b16 %v84
    %v230 = vunpack.c.l.b16 %v85
    %v231 = vunpack.c.l.b16 %v86
    %v232 = vunpack.c.h.b16 %v86
    %v233 = vunpack.c.l.b16 %v87
    %v234 = vunpack.c.l.b16 %v88
    %v235 = vunpack.c.h.b16 %v88
    %v236 = vunpack.c.l.b16 %v89
    %v237 = vunpack.c.l.b16 %v90
    %v238 = vunpack.c.h.b16 %v90
    %v239 = vunpack.c.l.b16 %v91
    %v240 = vunpack.c.l.b16 %v92
    %v241 = vunpack.c.h.b16 %v92
    %v242 = vunpack.c.l.b16 %v93
    %v243 = vunpack.c.l.b16 %v94
    %v244 = vunpack.c.h.b16 %v94
    %v245 = vunpack.c.l.b16 %v95
    %v246 = vunpack.c.l.b16 %v96
    %v247 = vunpack.c.h.b16 %v96
    %v248 = vunpack.c.l.b16 %v97
    %v249 = vunpack.c.l.b16 %v98
    %v250 = vunpack.c.h.b16 %v98
    %v251 = vunpack.c.l.b16 %v99
    %v252 = vpack.c.b16 %v207, %v204
    %v253 = vpack.c.b16 %v208, %v205
    %v254 = vpack.c.b16 %v209, %v206
    %v255 = vpack.c.b16 %v213, %v210
    %v256 = vpack.c.b16 %v214, %v211
    %v257 = vpack.c.b16 %v215, %v212
    %v258 = vpack.c.b16 %v219, %v216
    %v259 = vpack.c.b16 %v220, %v217
    %v260 = vpack.c.b16 %v221, %v218
    %v261 = vpack.c.b16 %v225, %v222
    %v262 = vpack.c.b16 %v226, %v223
    %v263 = vpack.c.b16 %v227, %v224
    %v264 = vpack.c.b16 %v231, %v228
    %v265 = vpack.c.b16 %v232, %v229
    %v266 = vpack.c.b16 %v233, %v230
    %v267 = vpack.c.b16 %v237, %v234
    %v268 = vpack.c.b16 %v238, %v235
    %v269 = vpack.c.b16 %v239, %v236
    %v270 = vpack.c.b16 %v243, %v240
    %v271 = vpack.c.b16 %v244, %v241
    %v272 = vpack.c.b16 %v245, %v242
    %v273 = vpack.c.b16 %v249, %v246
    %v274 = vpack.c.b16 %v250, %v247
    %v275 = vpack.c.b16 %v251, %v248
    %v364 = vunpack.c.l.b16 %v100
    %v365 = vunpack.c.h.b16 %v100
    %v366 = vunpack.c.l.b16 %v101
    %v367 = vunpack.c.l.b16 %v102
    %v368 = vunpack.c.h.b16 %v102
    %v369 = vunpack.c.l.b16 %v103
    %v370 = vunpack.c.l.b16 %v104
    %v371 = vunpack.c.h.b16 %v104
    %v372 = vunpack.c.l.b16 %v105
    %v373 = vunpack.c.l.b16 %v106
    %v374 = vunpack.c.h.b16 %v106
    %v375 = vunpack.c.l.b16 %v107
    %v376 = vunpack.c.l.b16 %v108
    %v377 = vunpack.c.h.b16 %v108
    %v378 = vunpack.c.l.b16 %v109
    %v379 = vunpack.c.l.b16 %v110
    %v380 = vunpack.c.h.b16 %v110
    %v381 = vunpack.c.l.b16 %v111
    %v382 = vunpack.c.l.b16 %v112
    %v383 = vunpack.c.h.b16 %v112
    %v384 = vunpack.c.l.b16 %v113
    %v385 = vunpack.c.l.b16 %v114
    %v386 = vunpack.c.h.b16 %v114
    %v387 = vunpack.c.l.b16 %v115
    %v388 = vunpack.c.l.b16 %v116
    %v389 = vunpack.c.h.b16 %v116
    %v390 = vunpack.c.l.b16 %v117
    %v391 = vunpack.c.l.b16 %v118
    %v392 = vunpack.c.h.b16 %v118
    %v393 = vunpack.c.l.b16 %v119
    %v394 = vunpack.c.l.b16 %v120
    %v395 = vunpack.c.h.b16 %v120
    %v396 = vunpack.c.l.b16 %v121
    %v397 = vunpack.c.l.b16 %v122
    %v398 = vunpack.c.h.b16 %v122
    %v399 = vunpack.c.l.b16 %v123
    %v400 = vunpack.c.l.b16 %v124
    %v401 = vunpack.c.h.b16 %v124
    %v402 = vunpack.c.l.b16 %v125
    %v403 = vunpack.c.l.b16 %v126
    %v404 = vunpack.c.h.b16 %v126
    %v405 = vunpack.c.l.b16 %v127
    %v406 = vunpack.c.l.b16 %v128
    %v407 = vunpack.c.h.b16 %v128
    %v408 = vunpack.c.l.b16 %v129
    %v409 = vunpack.c.l.b16 %v130
    %v410 = vunpack.c.h.b16 %v130
    %v411 = vunpack.c.l.b16 %v131
    %v412 = vunpack.c.l.b16 %v132
    %v413 = vunpack.c.h.b16 %v132
    %v414 = vunpack.c.l.b16 %v133
    %v415 = vunpack.c.l.b16 %v134
    %v416 = vunpack.c.h.b16 %v134
    %v417 = vunpack.c.l.b16 %v135
    %v418 = vunpack.c.l.b16 %v136
    %v419 = vunpack.c.h.b16 %v136
    %v420 = vunpack.c.l.b16 %v137
    %v421 = vunpack.c.l.b16 %v138
    %v422 = vunpack.c.h.b16 %v138
    %v423 = vunpack.c.l.b16 %v139
    %v424 = vunpack.c.l.b16 %v140
    %v425 = vunpack.c.h.b16 %v140
    %v426 = vunpack.c.l.b16 %v141
    %v427 = vunpack.c.l.b16 %v142
    %v428 = vunpack.c.h.b16 %v142
    %v429 = vunpack.c.l.b16 %v143
    %v430 = vunpack.c.l.b16 %v144
    %v431 = vunpack.c.h.b16 %v144
    %v432 = vunpack.c.l.b16 %v145
    %v433 = vunpack.c.l.b16 %v146
    %v434 = vunpack.c.h.b16 %v146
    %v435 = vunpack.c.l.b16 %v147
    %v436 = vunpack.c.l.b16 %v148
    %v437 = vunpack.c.h.b16 %v148
    %v438 = vunpack.c.l.b16 %v149
    %v439 = vunpack.c.l.b16 %v150
    %v440 = vunpack.c.h.b16 %v150
    %v441 = vunpack.c.l.b16 %v151
    %v442 = vunpack.c.l.b16 %v152
    %v443 = vunpack.c.h.b16 %v152
    %v444 = vunpack.c.l.b16 %v153
    %v445 = vunpack.c.l.b16 %v154
    %v446 = vunpack.c.h.b16 %v154
    %v447 = vunpack.c.l.b16 %v155
    %v448 = vunpack.c.l.b16 %v156
    %v449 = vunpack.c.h.b16 %v156
    %v450 = vunpack.c.l.b16 %v157
    %v451 = vunpack.c.l.b16 %v158
    %v452 = vunpack.c.h.b16 %v158
    %v453 = vunpack.c.l.b16 %v159
    %v454 = vunpack.c.l.b16 %v160
    %v455 = vunpack.c.h.b16 %v160
    %v456 = vunpack.c.l.b16 %v161
    %v457 = vunpack.c.l.b16 %v162
    %v458 = vunpack.c.h.b16 %v162
    %v459 = vunpack.c.l.b16 %v163
    %v460 = vunpack.c.l.b16 %v164
    %v461 = vunpack.c.h.b16 %v164
    %v462 = vunpack.c.l.b16 %v165
    %v463 = vunpack.c.l.b16 %v166
    %v464 = vunpack.c.h.b16 %v166
    %v465 = vunpack.c.l.b16 %v167
    %v466 = vunpack.c.l.b16 %v168
    %v467 = vunpack.c.h.b16 %v168
    %v468 = vunpack.c.l.b16 %v169
    %v469 = vunpack.c.l.b16 %v170
    %v470 = vunpack.c.h.b16 %v170
    %v471 = vunpack.c.l.b16 %v171
    %v472 = vpack.c.b16 %v367, %v364
    %v473 = vpack.c.b16 %v368, %v365
    %v474 = vpack.c.b16 %v369, %v366
    %v475 = vpack.c.b16 %v373, %v370
    %v476 = vpack.c.b16 %v374, %v371
    %v477 = vpack.c.b16 %v375, %v372
    %v478 = vpack.c.b16 %v379, %v376
    %v479 = vpack.c.b16 %v380, %v377
    %v480 = vpack.c.b16 %v381, %v378
    %v481 = vpack.c.b16 %v385, %v382
    %v482 = vpack.c.b16 %v386, %v383
    %v483 = vpack.c.b16 %v387, %v384
    %v484 = vpack.c.b16 %v391, %v388
    %v485 = vpack.c.b16 %v392, %v389
    %v486 = vpack.c.b16 %v393, %v390
    %v487 = vpack.c.b16 %v397, %v394
    %v488 = vpack.c.b16 %v398, %v395
    %v489 = vpack.c.b16 %v399, %v396
    %v490 = vpack.c.b16 %v403, %v400
    %v491 = vpack.c.b16 %v404, %v401
    %v492 = vpack.c.b16 %v405, %v402
    %v493 = vpack.c.b16 %v409, %v406
    %v494 = vpack.c.b16 %v410, %v407
    %v495 = vpack.c.b16 %v411, %v408
    %v496 = vpack.c.b16 %v415, %v412
    %v497 = vpack.c.b16 %v416, %v413
    %v498 = vpack.c.b16 %v417, %v414
    %v499 = vpack.c.b16 %v421, %v418
    %v500 = vpack.c.b16 %v422, %v419
    %v501 = vpack.c.b16 %v423, %v420
    %v502 = vpack.c.b16 %v427, %v424
    %v503 = vpack.c.b16 %v428, %v425
    %v504 = vpack.c.b16 %v429, %v426
    %v505 = vpack.c.b16 %v433, %v430
    %v506 = vpack.c.b16 %v434, %v431
    %v507 = vpack.c.b16 %v435, %v432
    %v508 = vpack.c.b16 %v439, %v436
    %v509 = vpack.c.b16 %v440, %v437
    %v510 = vpack.c.b16 %v441, %v438
    %v511 = vpack.c.b16 %v445, %v442
    %v512 = vpack.c.b16 %v446, %v443
    %v513 = vpack.c.b16 %v447, %v444
    %v514 = vpack.c.b16 %v451, %v448
    %v515 = vpack.c.b16 %v452, %v449
    %v516 = vpack.c.b16 %v453, %v450
    %v517 = vpack.c.b16 %v457, %v454
    %v518 = vpack.c.b16 %v458, %v455
    %v519 = vpack.c.b16 %v459, %v456
    %v520 = vpack.c.b16 %v463, %v460
    %v521 = vpack.c.b16 %v464, %v461
    %v522 = vpack.c.b16 %v465, %v462
    %v523 = vpack.c.b16 %v469, %v466
    %v524 = vpack.c.b16 %v470, %v467
    %v525 = vpack.c.b16 %v471, %v468
    %vm580 = vcmask 261120
    %v582 = vsel %vm580, %v254, 0
    %v585 = vsel %vm580, %v257, 0
    %v588 = vsel %vm580, %v260, 0
    %v591 = vsel %vm580, %v263, 0
    %v594 = vsel %vm580, %v266, 0
    %v597 = vsel %vm580, %v269, 0
    %v600 = vsel %vm580, %v272, 0
    %v603 = vsel %vm580, %v275, 0
    %605 = vmatprep.subr.bf16.mxu0 %v473
    %606 = vmatpush1.bf16.msra.mxu0 %v472
    %607 = vmatprep.subr.bf16.mxu0 %v476
    %608 = vmatpush1.bf16.msra.mxu0 %v475
    %609 = vmatprep.subr.bf16.mxu0 %v479
    %610 = vmatpush1.bf16.msra.mxu0 %v478
    %611 = vmatprep.subr.bf16.mxu0 %v482
    %612 = vmatpush1.bf16.msra.mxu0 %v481
    %613 = vmatprep.subr.bf16.mxu0 %v485
    %614 = vmatpush1.bf16.msra.mxu0 %v484
    %615 = vmatprep.subr.bf16.mxu0 %v488
    %616 = vmatpush1.bf16.msra.mxu0 %v487
    %617 = vmatprep.subr.bf16.mxu0 %v491
    %618 = vmatpush1.bf16.msra.mxu0 %v490
    %619 = vmatprep.subr.bf16.mxu0 %v494
    %620 = vmatpush1.bf16.msra.mxu0 %v493
    %621 = vmatprep.subr.bf16.mxu0 %v497
    %622 = vmatpush1.bf16.msra.mxu0 %v496
    %623 = vmatprep.subr.bf16.mxu0 %v500
    %624 = vmatpush1.bf16.msra.mxu0 %v499
    %625 = vmatprep.subr.bf16.mxu0 %v503
    %626 = vmatpush1.bf16.msra.mxu0 %v502
    %627 = vmatprep.subr.bf16.mxu0 %v506
    %628 = vmatpush1.bf16.msra.mxu0 %v505
    %629 = vmatprep.subr.bf16.mxu0 %v509
    %630 = vmatpush1.bf16.msra.mxu0 %v508
    %631 = vmatprep.subr.bf16.mxu0 %v512
    %632 = vmatpush1.bf16.msra.mxu0 %v511
    %633 = vmatprep.subr.bf16.mxu0 %v515
    %634 = vmatpush1.bf16.msra.mxu0 %v514
    %635 = vmatprep.subr.bf16.mxu0 %v518
    %636 = vmatpush1.bf16.msra.mxu0 %v517
    %637 = vmatprep.mubr.bf16.mxu0 %v253
    %638 = vmatmul.mubr.bf16.gmra.mrb[0].mxu0 %v252
    %v639 = vpop.f32.mrb[0].mxu0
    %v640 = vadd.f32 0.0, %v639
    %v641 = vpop.f32.mrb[0].mxu0
    %v642 = vadd.f32 0.0, %v641
    %v643 = vpop.f32.mrb[0].mxu0
    %v644 = vadd.f32 0.0, %v643
    %v645 = vpop.f32.mrb[0].mxu0
    %v646 = vadd.f32 0.0, %v645
    %647 = vmatprep.mubr.bf16.mxu0 %v256
    %648 = vmatmul.mubr.bf16.gmra.mrb[0].mxu0 %v255
    %v649 = vpop.f32.mrb[0].mxu0
    %v650 = vadd.f32 0.0, %v649
    %v651 = vpop.f32.mrb[0].mxu0
    %v652 = vadd.f32 0.0, %v651
    %v653 = vpop.f32.mrb[0].mxu0
    %v654 = vadd.f32 0.0, %v653
    %v655 = vpop.f32.mrb[0].mxu0
    %v656 = vadd.f32 0.0, %v655
    %657 = vmatprep.mubr.bf16.mxu0 %v259
    %658 = vmatmul.mubr.bf16.gmra.mrb[0].mxu0 %v258
    %v659 = vpop.f32.mrb[0].mxu0
    %v660 = vadd.f32 0.0, %v659
    %v661 = vpop.f32.mrb[0].mxu0
    %v662 = vadd.f32 0.0, %v661
    %v663 = vpop.f32.mrb[0].mxu0
    %v664 = vadd.f32 0.0, %v663
    %v665 = vpop.f32.mrb[0].mxu0
    %v666 = vadd.f32 0.0, %v665
    %667 = vmatprep.mubr.bf16.mxu0 %v262
    %668 = vmatmul.mubr.bf16.gmra.mrb[0].mxu0 %v261
    %v669 = vpop.f32.mrb[0].mxu0
    %v670 = vadd.f32 0.0, %v669
    %v671 = vpop.f32.mrb[0].mxu0
    %v672 = vadd.f32 0.0, %v671
    %v673 = vpop.f32.mrb[0].mxu0
    %v674 = vadd.f32 0.0, %v673
    %v675 = vpop.f32.mrb[0].mxu0
    %v676 = vadd.f32 0.0, %v675
    %677 = vmatprep.mubr.bf16.mxu0 %v265
    %678 = vmatmul.mubr.bf16.gmra.mrb[0].mxu0 %v264
    %v679 = vpop.f32.mrb[0].mxu0
    %v680 = vadd.f32 0.0, %v679
    %v681 = vpop.f32.mrb[0].mxu0
    %v682 = vadd.f32 0.0, %v681
    %v683 = vpop.f32.mrb[0].mxu0
    %v684 = vadd.f32 0.0, %v683
    %v685 = vpop.f32.mrb[0].mxu0
    %v686 = vadd.f32 0.0, %v685
    %687 = vmatprep.mubr.bf16.mxu0 %v268
    %688 = vmatmul.mubr.bf16.gmra.mrb[0].mxu0 %v267
    %v689 = vpop.f32.mrb[0].mxu0
    %v690 = vadd.f32 0.0, %v689
    %v691 = vpop.f32.mrb[0].mxu0
    %v692 = vadd.f32 0.0, %v691
    %v693 = vpop.f32.mrb[0].mxu0
    %v694 = vadd.f32 0.0, %v693
    %v695 = vpop.f32.mrb[0].mxu0
    %v696 = vadd.f32 0.0, %v695
    %697 = vmatprep.mubr.bf16.mxu0 %v271
    %698 = vmatmul.mubr.bf16.gmra.mrb[0].mxu0 %v270
    %v699 = vpop.f32.mrb[0].mxu0
    %v700 = vadd.f32 0.0, %v699
    %v701 = vpop.f32.mrb[0].mxu0
    %v702 = vadd.f32 0.0, %v701
    %v703 = vpop.f32.mrb[0].mxu0
    %v704 = vadd.f32 0.0, %v703
    %v705 = vpop.f32.mrb[0].mxu0
    %v706 = vadd.f32 0.0, %v705
    %707 = vmatprep.mubr.bf16.mxu0 %v274
    %708 = vmatmul.mubr.bf16.gmra.mrb[0].mxu0 %v273
    %v709 = vpop.f32.mrb[0].mxu0
    %v710 = vadd.f32 0.0, %v709
    %v711 = vpop.f32.mrb[0].mxu0
    %v712 = vadd.f32 0.0, %v711
    %v713 = vpop.f32.mrb[0].mxu0
    %v714 = vadd.f32 0.0, %v713
    %v715 = vpop.f32.mrb[0].mxu0
    %v716 = vadd.f32 0.0, %v715
    %717 = vdwg.mxu0
    %718 = vmatprep.subr.bf16.mxu0 %v521
    %719 = vmatpush1.bf16.msra.mxu0 %v520
    %720 = vmatprep.subr.bf16.mxu0 %v524
    %721 = vmatpush1.bf16.msra.mxu0 %v523
    %722 = vmatprep.subr.bf16.mxu0 0
    %723 = vmatpush1.bf16.msra.mxu0 0
    %724 = vmatprep.subr.bf16.mxu0 0
    %725 = vmatpush1.bf16.msra.mxu0 0
    %726 = vmatprep.subr.bf16.mxu0 0
    %727 = vmatpush1.bf16.msra.mxu0 0
    %728 = vmatprep.subr.bf16.mxu0 0
    %729 = vmatpush1.bf16.msra.mxu0 0
    %730 = vmatprep.subr.bf16.mxu0 0
    %731 = vmatpush1.bf16.msra.mxu0 0
    %732 = vmatprep.subr.bf16.mxu0 0
    %733 = vmatpush1.bf16.msra.mxu0 0
    %734 = vmatprep.subr.bf16.mxu0 0
    %735 = vmatpush1.bf16.msra.mxu0 0
    %736 = vmatprep.subr.bf16.mxu0 0
    %737 = vmatpush1.bf16.msra.mxu0 0
    %738 = vmatprep.subr.bf16.mxu0 0
    %739 = vmatpush1.bf16.msra.mxu0 0
    %740 = vmatprep.subr.bf16.mxu0 0
    %741 = vmatpush1.bf16.msra.mxu0 0
    %742 = vmatprep.subr.bf16.mxu0 0
    %743 = vmatpush1.bf16.msra.mxu0 0
    %744 = vmatprep.subr.bf16.mxu0 0
    %745 = vmatpush1.bf16.msra.mxu0 0
    %746 = vmatprep.subr.bf16.mxu0 0
    %747 = vmatpush1.bf16.msra.mxu0 0
    %748 = vmatprep.subr.bf16.mxu0 0
    %749 = vmatpush1.bf16.msra.mxu0 0
    %750 = vmatprep.mubr.bf16.mxu0 0
    %751 = vmatmul.mubr.bf16.gmra.mrb[0].mxu0 %v582
    %v752 = vpop.f32.mrb[0].mxu0
    %v753 = vadd.f32 %v640, %v752
    %v754 = vpop.f32.mrb[0].mxu0
    %v755 = vadd.f32 %v642, %v754
    %v756 = vpop.f32.mrb[0].mxu0
    %v757 = vadd.f32 %v644, %v756
    %v758 = vpop.f32.mrb[0].mxu0
    %v759 = vadd.f32 %v646, %v758
    %760 = vmatprep.mubr.bf16.mxu0 0
    %761 = vmatmul.mubr.bf16.gmra.mrb[0].mxu0 %v585
    %v762 = vpop.f32.mrb[0].mxu0
    %v763 = vadd.f32 %v650, %v762
    %v764 = vpop.f32.mrb[0].mxu0
    %v765 = vadd.f32 %v652, %v764
    %v766 = vpop.f32.mrb[0].mxu0
    %v767 = vadd.f32 %v654, %v766
    %v768 = vpop.f32.mrb[0].mxu0
    %v769 = vadd.f32 %v656, %v768
    %770 = vmatprep.mubr.bf16.mxu0 0
    %771 = vmatmul.mubr.bf16.gmra.mrb[0].mxu0 %v588
    %v772 = vpop.f32.mrb[0].mxu0
    %v773 = vadd.f32 %v660, %v772
    %v774 = vpop.f32.mrb[0].mxu0
    %v775 = vadd.f32 %v662, %v774
    %v776 = vpop.f32.mrb[0].mxu0
    %v777 = vadd.f32 %v664, %v776
    %v778 = vpop.f32.mrb[0].mxu0
    %v779 = vadd.f32 %v666, %v778
    %780 = vmatprep.mubr.bf16.mxu0 0
    %781 = vmatmul.mubr.bf16.gmra.mrb[0].mxu0 %v591
    %v782 = vpop.f32.mrb[0].mxu0
    %v783 = vadd.f32 %v670, %v782
    %v784 = vpop.f32.mrb[0].mxu0
    %v785 = vadd.f32 %v672, %v784
    %v786 = vpop.f32.mrb[0].mxu0
    %v787 = vadd.f32 %v674, %v786
    %v788 = vpop.f32.mrb[0].mxu0
    %v789 = vadd.f32 %v676, %v788
    %790 = vmatprep.mubr.bf16.mxu0 0
    %791 = vmatmul.mubr.bf16.gmra.mrb[0].mxu0 %v594
    %v792 = vpop.f32.mrb[0].mxu0
    %v793 = vadd.f32 %v680, %v792
    %v794 = vpop.f32.mrb[0].mxu0
    %v795 = vadd.f32 %v682, %v794
    %v796 = vpop.f32.mrb[0].mxu0
    %v797 = vadd.f32 %v684, %v796
    %v798 = vpop.f32.mrb[0].mxu0
    %v799 = vadd.f32 %v686, %v798
    %800 = vmatprep.mubr.bf16.mxu0 0
    %801 = vmatmul.mubr.bf16.gmra.mrb[0].mxu0 %v597
    %v802 = vpop.f32.mrb[0].mxu0
    %v803 = vadd.f32 %v690, %v802
    %v804 = vpop.f32.mrb[0].mxu0
    %v805 = vadd.f32 %v692, %v804
    %v806 = vpop.f32.mrb[0].mxu0
    %v807 = vadd.f32 %v694, %v806
    %v808 = vpop.f32.mrb[0].mxu0
    %v809 = vadd.f32 %v696, %v808
    %810 = vmatprep.mubr.bf16.mxu0 0
    %811 = vmatmul.mubr.bf16.gmra.mrb[0].mxu0 %v600
    %v812 = vpop.f32.mrb[0].mxu0
    %v813 = vadd.f32 %v700, %v812
    %v814 = vpop.f32.mrb[0].mxu0
    %v815 = vadd.f32 %v702, %v814
    %v816 = vpop.f32.mrb[0].mxu0
    %v817 = vadd.f32 %v704, %v816
    %v818 = vpop.f32.mrb[0].mxu0
    %v819 = vadd.f32 %v706, %v818
    %820 = vmatprep.mubr.bf16.mxu0 0
    %821 = vmatmul.mubr.bf16.gmra.mrb[0].mxu0 %v603
    %v822 = vpop.f32.mrb[0].mxu0
    %v823 = vadd.f32 %v710, %v822
    %v824 = vpop.f32.mrb[0].mxu0
    %v825 = vadd.f32 %v712, %v824
    %v826 = vpop.f32.mrb[0].mxu0
    %v827 = vadd.f32 %v714, %v826
    %v828 = vpop.f32.mrb[0].mxu0
    %v829 = vadd.f32 %v716, %v828
    %830 = vdwg.mxu0
    %831 = vmatprep.subr.bf16.mxu0 0
    %832 = vmatpush1.bf16.msra.mxu0 %v474
    %833 = vmatprep.subr.bf16.mxu0 0
    %834 = vmatpush1.bf16.msra.mxu0 %v477
    %835 = vmatprep.subr.bf16.mxu0 0
    %836 = vmatpush1.bf16.msra.mxu0 %v480
    %837 = vmatprep.subr.bf16.mxu0 0
    %838 = vmatpush1.bf16.msra.mxu0 %v483
    %839 = vmatprep.subr.bf16.mxu0 0
    %840 = vmatpush1.bf16.msra.mxu0 %v486
    %841 = vmatprep.subr.bf16.mxu0 0
    %842 = vmatpush1.bf16.msra.mxu0 %v489
    %843 = vmatprep.subr.bf16.mxu0 0
    %844 = vmatpush1.bf16.msra.mxu0 %v492
    %845 = vmatprep.subr.bf16.mxu0 0
    %846 = vmatpush1.bf16.msra.mxu0 %v495
    %847 = vmatprep.subr.bf16.mxu0 0
    %848 = vmatpush1.bf16.msra.mxu0 %v498
    %849 = vmatprep.subr.bf16.mxu0 0
    %850 = vmatpush1.bf16.msra.mxu0 %v501
    %851 = vmatprep.subr.bf16.mxu0 0
    %852 = vmatpush1.bf16.msra.mxu0 %v504
    %853 = vmatprep.subr.bf16.mxu0 0
    %854 = vmatpush1.bf16.msra.mxu0 %v507
    %855 = vmatprep.subr.bf16.mxu0 0
    %856 = vmatpush1.bf16.msra.mxu0 %v510
    %857 = vmatprep.subr.bf16.mxu0 0
    %858 = vmatpush1.bf16.msra.mxu0 %v513
    %859 = vmatprep.subr.bf16.mxu0 0
    %860 = vmatpush1.bf16.msra.mxu0 %v516
    %861 = vmatprep.subr.bf16.mxu0 0
    %862 = vmatpush1.bf16.msra.mxu0 %v519
    %863 = vmatprep.mubr.bf16.mxu0 %v253
    %864 = vmatmul.mubr.bf16.gmra.mrb[0].mxu0 %v252
    %v865 = vpop.f32.mrb[0].mxu0
    %v866 = vadd.f32 0.0, %v865
    %v867 = vpop.f32.mrb[0].mxu0
    %v868 = vpop.f32.mrb[0].mxu0
    %v869 = vadd.f32 0.0, %v868
    %v870 = vpop.f32.mrb[0].mxu0
    %871 = vmatprep.mubr.bf16.mxu0 %v256
    %872 = vmatmul.mubr.bf16.gmra.mrb[0].mxu0 %v255
    %v873 = vpop.f32.mrb[0].mxu0
    %v874 = vadd.f32 0.0, %v873
    %v875 = vpop.f32.mrb[0].mxu0
    %v876 = vpop.f32.mrb[0].mxu0
    %v877 = vadd.f32 0.0, %v876
    %v878 = vpop.f32.mrb[0].mxu0
    %879 = vmatprep.mubr.bf16.mxu0 %v259
    %880 = vmatmul.mubr.bf16.gmra.mrb[0].mxu0 %v258
    %v881 = vpop.f32.mrb[0].mxu0
    %v882 = vadd.f32 0.0, %v881
    %v883 = vpop.f32.mrb[0].mxu0
    %v884 = vpop.f32.mrb[0].mxu0
    %v885 = vadd.f32 0.0, %v884
    %v886 = vpop.f32.mrb[0].mxu0
    %887 = vmatprep.mubr.bf16.mxu0 %v262
    %888 = vmatmul.mubr.bf16.gmra.mrb[0].mxu0 %v261
    %v889 = vpop.f32.mrb[0].mxu0
    %v890 = vadd.f32 0.0, %v889
    %v891 = vpop.f32.mrb[0].mxu0
    %v892 = vpop.f32.mrb[0].mxu0
    %v893 = vadd.f32 0.0, %v892
    %v894 = vpop.f32.mrb[0].mxu0
    %895 = vmatprep.mubr.bf16.mxu0 %v265
    %896 = vmatmul.mubr.bf16.gmra.mrb[0].mxu0 %v264
    %v897 = vpop.f32.mrb[0].mxu0
    %v898 = vadd.f32 0.0, %v897
    %v899 = vpop.f32.mrb[0].mxu0
    %v900 = vpop.f32.mrb[0].mxu0
    %v901 = vadd.f32 0.0, %v900
    %v902 = vpop.f32.mrb[0].mxu0
    %903 = vmatprep.mubr.bf16.mxu0 %v268
    %904 = vmatmul.mubr.bf16.gmra.mrb[0].mxu0 %v267
    %v905 = vpop.f32.mrb[0].mxu0
    %v906 = vadd.f32 0.0, %v905
    %v907 = vpop.f32.mrb[0].mxu0
    %v908 = vpop.f32.mrb[0].mxu0
    %v909 = vadd.f32 0.0, %v908
    %v910 = vpop.f32.mrb[0].mxu0
    %911 = vmatprep.mubr.bf16.mxu0 %v271
    %912 = vmatmul.mubr.bf16.gmra.mrb[0].mxu0 %v270
    %v913 = vpop.f32.mrb[0].mxu0
    %v914 = vadd.f32 0.0, %v913
    %v915 = vpop.f32.mrb[0].mxu0
    %v916 = vpop.f32.mrb[0].mxu0
    %v917 = vadd.f32 0.0, %v916
    %v918 = vpop.f32.mrb[0].mxu0
    %919 = vmatprep.mubr.bf16.mxu0 %v274
    %920 = vmatmul.mubr.bf16.gmra.mrb[0].mxu0 %v273
    %v921 = vpop.f32.mrb[0].mxu0
    %v922 = vadd.f32 0.0, %v921
    %v923 = vpop.f32.mrb[0].mxu0
    %v924 = vpop.f32.mrb[0].mxu0
    %v925 = vadd.f32 0.0, %v924
    %v926 = vpop.f32.mrb[0].mxu0
    %927 = vdwg.mxu0
    %928 = vmatprep.subr.bf16.mxu0 0
    %929 = vmatpush1.bf16.msra.mxu0 %v522
    %930 = vmatprep.subr.bf16.mxu0 0
    %931 = vmatpush1.bf16.msra.mxu0 %v525
    %932 = vmatprep.subr.bf16.mxu0 0
    %933 = vmatpush1.bf16.msra.mxu0 0
    %934 = vmatprep.subr.bf16.mxu0 0
    %935 = vmatpush1.bf16.msra.mxu0 0
    %936 = vmatprep.subr.bf16.mxu0 0
    %937 = vmatpush1.bf16.msra.mxu0 0
    %938 = vmatprep.subr.bf16.mxu0 0
    %939 = vmatpush1.bf16.msra.mxu0 0
    %940 = vmatprep.subr.bf16.mxu0 0
    %941 = vmatpush1.bf16.msra.mxu0 0
    %942 = vmatprep.subr.bf16.mxu0 0
    %943 = vmatpush1.bf16.msra.mxu0 0
    %944 = vmatprep.subr.bf16.mxu0 0
    %945 = vmatpush1.bf16.msra.mxu0 0
    %946 = vmatprep.subr.bf16.mxu0 0
    %947 = vmatpush1.bf16.msra.mxu0 0
    %948 = vmatprep.subr.bf16.mxu0 0
    %949 = vmatpush1.bf16.msra.mxu0 0
    %950 = vmatprep.subr.bf16.mxu0 0
    %951 = vmatpush1.bf16.msra.mxu0 0
    %952 = vmatprep.subr.bf16.mxu0 0
    %953 = vmatpush1.bf16.msra.mxu0 0
    %954 = vmatprep.subr.bf16.mxu0 0
    %955 = vmatpush1.bf16.msra.mxu0 0
    %956 = vmatprep.subr.bf16.mxu0 0
    %957 = vmatpush1.bf16.msra.mxu0 0
    %958 = vmatprep.subr.bf16.mxu0 0
    %959 = vmatpush1.bf16.msra.mxu0 0
    %960 = vmatprep.mubr.bf16.mxu0 0
    %961 = vmatmul.mubr.bf16.gmra.mrb[0].mxu0 %v582
    %v962 = vpop.f32.mrb[0].mxu0
    %v963 = vadd.f32 %v866, %v962
    %v964 = vpop.f32.mrb[0].mxu0
    %v965 = vpop.f32.mrb[0].mxu0
    %v966 = vadd.f32 %v869, %v965
    %v967 = vpop.f32.mrb[0].mxu0
    %968 = vmatprep.mubr.bf16.mxu0 0
    %969 = vmatmul.mubr.bf16.gmra.mrb[0].mxu0 %v585
    %v970 = vpop.f32.mrb[0].mxu0
    %v971 = vadd.f32 %v874, %v970
    %v972 = vpop.f32.mrb[0].mxu0
    %v973 = vpop.f32.mrb[0].mxu0
    %v974 = vadd.f32 %v877, %v973
    %v975 = vpop.f32.mrb[0].mxu0
    %976 = vmatprep.mubr.bf16.mxu0 0
    %977 = vmatmul.mubr.bf16.gmra.mrb[0].mxu0 %v588
    %v978 = vpop.f32.mrb[0].mxu0
    %v979 = vadd.f32 %v882, %v978
    %v980 = vpop.f32.mrb[0].mxu0
    %v981 = vpop.f32.mrb[0].mxu0
    %v982 = vadd.f32 %v885, %v981
    %v983 = vpop.f32.mrb[0].mxu0
    %984 = vmatprep.mubr.bf16.mxu0 0
    %985 = vmatmul.mubr.bf16.gmra.mrb[0].mxu0 %v591
    %v986 = vpop.f32.mrb[0].mxu0
    %v987 = vadd.f32 %v890, %v986
    %v988 = vpop.f32.mrb[0].mxu0
    %v989 = vpop.f32.mrb[0].mxu0
    %v990 = vadd.f32 %v893, %v989
    %v991 = vpop.f32.mrb[0].mxu0
    %992 = vmatprep.mubr.bf16.mxu0 0
    %993 = vmatmul.mubr.bf16.gmra.mrb[0].mxu0 %v594
    %v994 = vpop.f32.mrb[0].mxu0
    %v995 = vadd.f32 %v898, %v994
    %v996 = vpop.f32.mrb[0].mxu0
    %v997 = vpop.f32.mrb[0].mxu0
    %v998 = vadd.f32 %v901, %v997
    %v999 = vpop.f32.mrb[0].mxu0
    %1000 = vmatprep.mubr.bf16.mxu0 0
    %1001 = vmatmul.mubr.bf16.gmra.mrb[0].mxu0 %v597
    %v1002 = vpop.f32.mrb[0].mxu0
    %v1003 = vadd.f32 %v906, %v1002
    %v1004 = vpop.f32.mrb[0].mxu0
    %v1005 = vpop.f32.mrb[0].mxu0
    %v1006 = vadd.f32 %v909, %v1005
    %v1007 = vpop.f32.mrb[0].mxu0
    %1008 = vmatprep.mubr.bf16.mxu0 0
    %1009 = vmatmul.mubr.bf16.gmra.mrb[0].mxu0 %v600
    %v1010 = vpop.f32.mrb[0].mxu0
    %v1011 = vadd.f32 %v914, %v1010
    %v1012 = vpop.f32.mrb[0].mxu0
    %v1013 = vpop.f32.mrb[0].mxu0
    %v1014 = vadd.f32 %v917, %v1013
    %v1015 = vpop.f32.mrb[0].mxu0
    %1016 = vmatprep.mubr.bf16.mxu0 0
    %1017 = vmatmul.mubr.bf16.gmra.mrb[0].mxu0 %v603
    %v1018 = vpop.f32.mrb[0].mxu0
    %v1019 = vadd.f32 %v922, %v1018
    %v1020 = vpop.f32.mrb[0].mxu0
    %v1021 = vpop.f32.mrb[0].mxu0
    %v1022 = vadd.f32 %v925, %v1021
    %v1023 = vpop.f32.mrb[0].mxu0
    %1024 = vdwg.mxu0
    %v1041 = vunpack.c.l.b16 %v36
    %v1042 = vunpack.c.l.b16 %v37
    %v1043 = vunpack.c.l.b16 %v38
    %v1044 = vunpack.c.l.b16 %v39
    %v1045 = vunpack.c.l.b16 %v40
    %v1046 = vunpack.c.l.b16 %v41
    %v1047 = vunpack.c.l.b16 %v42
    %v1048 = vunpack.c.l.b16 %v43
    %v1049 = vunpack.c.l.b16 %v44
    %v1050 = vunpack.c.l.b16 %v45
    %v1051 = vunpack.c.l.b16 %v46
    %v1052 = vunpack.c.l.b16 %v47
    %v1053 = vunpack.c.l.b16 %v48
    %v1054 = vunpack.c.l.b16 %v49
    %v1055 = vunpack.c.l.b16 %v50
    %v1056 = vunpack.c.l.b16 %v51
    %v1057 = vpack.c.b16 %v1042, %v1041
    %v1058 = vpack.c.b16 %v1044, %v1043
    %v1059 = vpack.c.b16 %v1046, %v1045
    %v1060 = vpack.c.b16 %v1048, %v1047
    %v1061 = vpack.c.b16 %v1050, %v1049
    %v1062 = vpack.c.b16 %v1052, %v1051
    %v1063 = vpack.c.b16 %v1054, %v1053
    %v1064 = vpack.c.b16 %v1056, %v1055
    %v1081 = vunpack.c.l.b16 %v52
    %v1082 = vunpack.c.h.b16 %v52
    %v1083 = vunpack.c.l.b16 %v53
    %v1084 = vunpack.c.l.b16 %v54
    %v1085 = vunpack.c.h.b16 %v54
    %v1086 = vunpack.c.l.b16 %v55
    %v1087 = vunpack.c.l.b16 %v56
    %v1088 = vunpack.c.h.b16 %v56
    %v1089 = vunpack.c.l.b16 %v57
    %v1090 = vunpack.c.l.b16 %v58
    %v1091 = vunpack.c.h.b16 %v58
    %v1092 = vunpack.c.l.b16 %v59
    %v1093 = vunpack.c.l.b16 %v60
    %v1094 = vunpack.c.h.b16 %v60
    %v1095 = vunpack.c.l.b16 %v61
    %v1096 = vunpack.c.l.b16 %v62
    %v1097 = vunpack.c.h.b16 %v62
    %v1098 = vunpack.c.l.b16 %v63
    %v1099 = vunpack.c.l.b16 %v64
    %v1100 = vunpack.c.h.b16 %v64
    %v1101 = vunpack.c.l.b16 %v65
    %v1102 = vunpack.c.l.b16 %v66
    %v1103 = vunpack.c.h.b16 %v66
    %v1104 = vunpack.c.l.b16 %v67
    %v1105 = vpack.c.b16 %v1084, %v1081
    %v1106 = vpack.c.b16 %v1085, %v1082
    %v1107 = vpack.c.b16 %v1086, %v1083
    %v1108 = vpack.c.b16 %v1090, %v1087
    %v1109 = vpack.c.b16 %v1091, %v1088
    %v1110 = vpack.c.b16 %v1092, %v1089
    %v1111 = vpack.c.b16 %v1096, %v1093
    %v1112 = vpack.c.b16 %v1097, %v1094
    %v1113 = vpack.c.b16 %v1098, %v1095
    %v1114 = vpack.c.b16 %v1102, %v1099
    %v1115 = vpack.c.b16 %v1103, %v1100
    %v1116 = vpack.c.b16 %v1104, %v1101
    %vm1129 = vcmask 523264
    %v1131 = vsel %vm1129, %v1057, 0
    %v1134 = vsel %vm1129, %v1058, 0
    %v1137 = vsel %vm1129, %v1059, 0
    %v1140 = vsel %vm1129, %v1060, 0
    %v1143 = vsel %vm1129, %v1061, 0
    %v1146 = vsel %vm1129, %v1062, 0
    %v1149 = vsel %vm1129, %v1063, 0
    %v1152 = vsel %vm1129, %v1064, 0
    %1154 = vmatprep.subr.bf16.mxu0 %v1106
    %1155 = vmatpush1.bf16.msra.mxu0 %v1105
    %1156 = vmatprep.subr.bf16.mxu0 %v1109
    %1157 = vmatpush1.bf16.msra.mxu0 %v1108
    %1158 = vmatprep.subr.bf16.mxu0 %v1112
    %1159 = vmatpush1.bf16.msra.mxu0 %v1111
    %1160 = vmatprep.subr.bf16.mxu0 %v1115
    %1161 = vmatpush1.bf16.msra.mxu0 %v1114
    %1162 = vmatprep.subr.bf16.mxu0 0
    %1163 = vmatpush1.bf16.msra.mxu0 0
    %1164 = vmatprep.subr.bf16.mxu0 0
    %1165 = vmatpush1.bf16.msra.mxu0 0
    %1166 = vmatprep.subr.bf16.mxu0 0
    %1167 = vmatpush1.bf16.msra.mxu0 0
    %1168 = vmatprep.subr.bf16.mxu0 0
    %1169 = vmatpush1.bf16.msra.mxu0 0
    %1170 = vmatprep.subr.bf16.mxu0 0
    %1171 = vmatpush1.bf16.msra.mxu0 0
    %1172 = vmatprep.subr.bf16.mxu0 0
    %1173 = vmatpush1.bf16.msra.mxu0 0
    %1174 = vmatprep.subr.bf16.mxu0 0
    %1175 = vmatpush1.bf16.msra.mxu0 0
    %1176 = vmatprep.subr.bf16.mxu0 0
    %1177 = vmatpush1.bf16.msra.mxu0 0
    %1178 = vmatprep.subr.bf16.mxu0 0
    %1179 = vmatpush1.bf16.msra.mxu0 0
    %1180 = vmatprep.subr.bf16.mxu0 0
    %1181 = vmatpush1.bf16.msra.mxu0 0
    %1182 = vmatprep.subr.bf16.mxu0 0
    %1183 = vmatpush1.bf16.msra.mxu0 0
    %1184 = vmatprep.subr.bf16.mxu0 0
    %1185 = vmatpush1.bf16.msra.mxu0 0
    %1186 = vmatprep.mubr.bf16.mxu0 0
    %1187 = vmatmul.mubr.bf16.gmra.mrb[0].mxu0 %v1131
    %v1188 = vpop.f32.mrb[0].mxu0
    %v1189 = vadd.f32 %v753, %v1188
    %v1190 = vpop.f32.mrb[0].mxu0
    %v1191 = vadd.f32 %v755, %v1190
    %v1192 = vpop.f32.mrb[0].mxu0
    %v1193 = vadd.f32 %v757, %v1192
    %v1194 = vpop.f32.mrb[0].mxu0
    %v1195 = vadd.f32 %v759, %v1194
    %1196 = vmatprep.mubr.bf16.mxu0 0
    %1197 = vmatmul.mubr.bf16.gmra.mrb[0].mxu0 %v1134
    %v1198 = vpop.f32.mrb[0].mxu0
    %v1199 = vadd.f32 %v763, %v1198
    %v1200 = vpop.f32.mrb[0].mxu0
    %v1201 = vadd.f32 %v765, %v1200
    %v1202 = vpop.f32.mrb[0].mxu0
    %v1203 = vadd.f32 %v767, %v1202
    %v1204 = vpop.f32.mrb[0].mxu0
    %v1205 = vadd.f32 %v769, %v1204
    %1206 = vmatprep.mubr.bf16.mxu0 0
    %1207 = vmatmul.mubr.bf16.gmra.mrb[0].mxu0 %v1137
    %v1208 = vpop.f32.mrb[0].mxu0
    %v1209 = vadd.f32 %v773, %v1208
    %v1210 = vpop.f32.mrb[0].mxu0
    %v1211 = vadd.f32 %v775, %v1210
    %v1212 = vpop.f32.mrb[0].mxu0
    %v1213 = vadd.f32 %v777, %v1212
    %v1214 = vpop.f32.mrb[0].mxu0
    %v1215 = vadd.f32 %v779, %v1214
    %1216 = vmatprep.mubr.bf16.mxu0 0
    %1217 = vmatmul.mubr.bf16.gmra.mrb[0].mxu0 %v1140
    %v1218 = vpop.f32.mrb[0].mxu0
    %v1219 = vadd.f32 %v783, %v1218
    %v1220 = vpop.f32.mrb[0].mxu0
    %v1221 = vadd.f32 %v785, %v1220
    %v1222 = vpop.f32.mrb[0].mxu0
    %v1223 = vadd.f32 %v787, %v1222
    %v1224 = vpop.f32.mrb[0].mxu0
    %v1225 = vadd.f32 %v789, %v1224
    %1226 = vmatprep.mubr.bf16.mxu0 0
    %1227 = vmatmul.mubr.bf16.gmra.mrb[0].mxu0 %v1143
    %v1228 = vpop.f32.mrb[0].mxu0
    %v1229 = vadd.f32 %v793, %v1228
    %v1230 = vpop.f32.mrb[0].mxu0
    %v1231 = vadd.f32 %v795, %v1230
    %v1232 = vpop.f32.mrb[0].mxu0
    %v1233 = vadd.f32 %v797, %v1232
    %v1234 = vpop.f32.mrb[0].mxu0
    %v1235 = vadd.f32 %v799, %v1234
    %1236 = vmatprep.mubr.bf16.mxu0 0
    %1237 = vmatmul.mubr.bf16.gmra.mrb[0].mxu0 %v1146
    %v1238 = vpop.f32.mrb[0].mxu0
    %v1239 = vadd.f32 %v803, %v1238
    %v1240 = vpop.f32.mrb[0].mxu0
    %v1241 = vadd.f32 %v805, %v1240
    %v1242 = vpop.f32.mrb[0].mxu0
    %v1243 = vadd.f32 %v807, %v1242
    %v1244 = vpop.f32.mrb[0].mxu0
    %v1245 = vadd.f32 %v809, %v1244
    %1246 = vmatprep.mubr.bf16.mxu0 0
    %1247 = vmatmul.mubr.bf16.gmra.mrb[0].mxu0 %v1149
    %v1248 = vpop.f32.mrb[0].mxu0
    %v1249 = vadd.f32 %v813, %v1248
    %v1250 = vpop.f32.mrb[0].mxu0
    %v1251 = vadd.f32 %v815, %v1250
    %v1252 = vpop.f32.mrb[0].mxu0
    %v1253 = vadd.f32 %v817, %v1252
    %v1254 = vpop.f32.mrb[0].mxu0
    %v1255 = vadd.f32 %v819, %v1254
    %1256 = vmatprep.mubr.bf16.mxu0 0
    %1257 = vmatmul.mubr.bf16.gmra.mrb[0].mxu0 %v1152
    %v1258 = vpop.f32.mrb[0].mxu0
    %v1259 = vadd.f32 %v823, %v1258
    %v1260 = vpop.f32.mrb[0].mxu0
    %v1261 = vadd.f32 %v825, %v1260
    %v1262 = vpop.f32.mrb[0].mxu0
    %v1263 = vadd.f32 %v827, %v1262
    %v1264 = vpop.f32.mrb[0].mxu0
    %v1265 = vadd.f32 %v829, %v1264
    %1266 = vdwg.mxu0
    %1267 = vmatprep.subr.bf16.mxu0 0
    %1268 = vmatpush1.bf16.msra.mxu0 %v1107
    %1269 = vmatprep.subr.bf16.mxu0 0
    %1270 = vmatpush1.bf16.msra.mxu0 %v1110
    %1271 = vmatprep.subr.bf16.mxu0 0
    %1272 = vmatpush1.bf16.msra.mxu0 %v1113
    %1273 = vmatprep.subr.bf16.mxu0 0
    %1274 = vmatpush1.bf16.msra.mxu0 %v1116
    %1275 = vmatprep.subr.bf16.mxu0 0
    %1276 = vmatpush1.bf16.msra.mxu0 0
    %1277 = vmatprep.subr.bf16.mxu0 0
    %1278 = vmatpush1.bf16.msra.mxu0 0
    %1279 = vmatprep.subr.bf16.mxu0 0
    %1280 = vmatpush1.bf16.msra.mxu0 0
    %1281 = vmatprep.subr.bf16.mxu0 0
    %1282 = vmatpush1.bf16.msra.mxu0 0
    %1283 = vmatprep.subr.bf16.mxu0 0
    %1284 = vmatpush1.bf16.msra.mxu0 0
    %1285 = vmatprep.subr.bf16.mxu0 0
    %1286 = vmatpush1.bf16.msra.mxu0 0
    %1287 = vmatprep.subr.bf16.mxu0 0
    %1288 = vmatpush1.bf16.msra.mxu0 0
    %1289 = vmatprep.subr.bf16.mxu0 0
    %1290 = vmatpush1.bf16.msra.mxu0 0
    %1291 = vmatprep.subr.bf16.mxu0 0
    %1292 = vmatpush1.bf16.msra.mxu0 0
    %1293 = vmatprep.subr.bf16.mxu0 0
    %1294 = vmatpush1.bf16.msra.mxu0 0
    %1295 = vmatprep.subr.bf16.mxu0 0
    %1296 = vmatpush1.bf16.msra.mxu0 0
    %1297 = vmatprep.subr.bf16.mxu0 0
    %1298 = vmatpush1.bf16.msra.mxu0 0
    %1299 = vmatprep.mubr.bf16.mxu0 0
    %1300 = vmatmul.mubr.bf16.gmra.mrb[0].mxu0 %v1131
    %v1301 = vpop.f32.mrb[0].mxu0
    %v1302 = vadd.f32 %v963, %v1301
    %v1303 = vpop.f32.mrb[0].mxu0
    %v1304 = vpop.f32.mrb[0].mxu0
    %v1305 = vadd.f32 %v966, %v1304
    %v1306 = vpop.f32.mrb[0].mxu0
    %1307 = vmatprep.mubr.bf16.mxu0 0
    %1308 = vmatmul.mubr.bf16.gmra.mrb[0].mxu0 %v1134
    %v1309 = vpop.f32.mrb[0].mxu0
    %v1310 = vadd.f32 %v971, %v1309
    %v1311 = vpop.f32.mrb[0].mxu0
    %v1312 = vpop.f32.mrb[0].mxu0
    %v1313 = vadd.f32 %v974, %v1312
    %v1314 = vpop.f32.mrb[0].mxu0
    %1315 = vmatprep.mubr.bf16.mxu0 0
    %1316 = vmatmul.mubr.bf16.gmra.mrb[0].mxu0 %v1137
    %v1317 = vpop.f32.mrb[0].mxu0
    %v1318 = vadd.f32 %v979, %v1317
    %v1319 = vpop.f32.mrb[0].mxu0
    %v1320 = vpop.f32.mrb[0].mxu0
    %v1321 = vadd.f32 %v982, %v1320
    %v1322 = vpop.f32.mrb[0].mxu0
    %1323 = vmatprep.mubr.bf16.mxu0 0
    %1324 = vmatmul.mubr.bf16.gmra.mrb[0].mxu0 %v1140
    %v1325 = vpop.f32.mrb[0].mxu0
    %v1326 = vadd.f32 %v987, %v1325
    %v1327 = vpop.f32.mrb[0].mxu0
    %v1328 = vpop.f32.mrb[0].mxu0
    %v1329 = vadd.f32 %v990, %v1328
    %v1330 = vpop.f32.mrb[0].mxu0
    %1331 = vmatprep.mubr.bf16.mxu0 0
    %1332 = vmatmul.mubr.bf16.gmra.mrb[0].mxu0 %v1143
    %v1333 = vpop.f32.mrb[0].mxu0
    %v1334 = vadd.f32 %v995, %v1333
    %v1335 = vpop.f32.mrb[0].mxu0
    %v1336 = vpop.f32.mrb[0].mxu0
    %v1337 = vadd.f32 %v998, %v1336
    %v1338 = vpop.f32.mrb[0].mxu0
    %1339 = vmatprep.mubr.bf16.mxu0 0
    %1340 = vmatmul.mubr.bf16.gmra.mrb[0].mxu0 %v1146
    %v1341 = vpop.f32.mrb[0].mxu0
    %v1342 = vadd.f32 %v1003, %v1341
    %v1343 = vpop.f32.mrb[0].mxu0
    %v1344 = vpop.f32.mrb[0].mxu0
    %v1345 = vadd.f32 %v1006, %v1344
    %v1346 = vpop.f32.mrb[0].mxu0
    %1347 = vmatprep.mubr.bf16.mxu0 0
    %1348 = vmatmul.mubr.bf16.gmra.mrb[0].mxu0 %v1149
    %v1349 = vpop.f32.mrb[0].mxu0
    %v1350 = vadd.f32 %v1011, %v1349
    %v1351 = vpop.f32.mrb[0].mxu0
    %v1352 = vpop.f32.mrb[0].mxu0
    %v1353 = vadd.f32 %v1014, %v1352
    %v1354 = vpop.f32.mrb[0].mxu0
    %1355 = vmatprep.mubr.bf16.mxu0 0
    %1356 = vmatmul.mubr.bf16.gmra.mrb[0].mxu0 %v1152
    %v1357 = vpop.f32.mrb[0].mxu0
    %v1358 = vadd.f32 %v1019, %v1357
    %v1359 = vpop.f32.mrb[0].mxu0
    %v1360 = vpop.f32.mrb[0].mxu0
    %v1361 = vadd.f32 %v1022, %v1360
    %v1362 = vpop.f32.mrb[0].mxu0
    %1363 = vdwg.mxu0
    %v1364 = vld [vmem:[%s4] sm:$0x7]
    %v1366 = vlaneseq
    %v1367 = vshrl.u32 %v1366, 7
    %v1368 = vsub.s32 0, %v1367
    %v1369 = vrot.slane %v1364, %v1368
    %v1370 = vlaneseq
    %v1371 = vshrl.u32 %v1370, 7
    %v1372 = vsub.s32 1, %v1371
    %v1373 = vrot.slane %v1364, %v1372
    %v1374 = vlaneseq
    %v1375 = vshrl.u32 %v1374, 7
    %v1376 = vsub.s32 2, %v1375
    %v1377 = vrot.slane %v1364, %v1376
    %v1381 = vadd.f32 %v1189, %v1369
    %v1382 = vadd.f32 %v1191, %v1373
    %v1383 = vadd.f32 %v1302, %v1377
    %v1384 = vadd.f32 %v1193, %v1369
    %v1385 = vadd.f32 %v1195, %v1373
    %v1386 = vadd.f32 %v1305, %v1377
    %v1387 = vadd.f32 %v1199, %v1369
    %v1388 = vadd.f32 %v1201, %v1373
    %v1389 = vadd.f32 %v1310, %v1377
    %v1390 = vadd.f32 %v1203, %v1369
    %v1391 = vadd.f32 %v1205, %v1373
    %v1392 = vadd.f32 %v1313, %v1377
    %v1393 = vadd.f32 %v1209, %v1369
    %v1394 = vadd.f32 %v1211, %v1373
    %v1395 = vadd.f32 %v1318, %v1377
    %v1396 = vadd.f32 %v1213, %v1369
    %v1397 = vadd.f32 %v1215, %v1373
    %v1398 = vadd.f32 %v1321, %v1377
    %v1399 = vadd.f32 %v1219, %v1369
    %v1400 = vadd.f32 %v1221, %v1373
    %v1401 = vadd.f32 %v1326, %v1377
    %v1402 = vadd.f32 %v1223, %v1369
    %v1403 = vadd.f32 %v1225, %v1373
    %v1404 = vadd.f32 %v1329, %v1377
    %v1405 = vadd.f32 %v1229, %v1369
    %v1406 = vadd.f32 %v1231, %v1373
    %v1407 = vadd.f32 %v1334, %v1377
    %v1408 = vadd.f32 %v1233, %v1369
    %v1409 = vadd.f32 %v1235, %v1373
    %v1410 = vadd.f32 %v1337, %v1377
    %v1411 = vadd.f32 %v1239, %v1369
    %v1412 = vadd.f32 %v1241, %v1373
    %v1413 = vadd.f32 %v1342, %v1377
    %v1414 = vadd.f32 %v1243, %v1369
    %v1415 = vadd.f32 %v1245, %v1373
    %v1416 = vadd.f32 %v1345, %v1377
    %v1417 = vadd.f32 %v1249, %v1369
    %v1418 = vadd.f32 %v1251, %v1373
    %v1419 = vadd.f32 %v1350, %v1377
    %v1420 = vadd.f32 %v1253, %v1369
    %v1421 = vadd.f32 %v1255, %v1373
    %v1422 = vadd.f32 %v1353, %v1377
    %v1423 = vadd.f32 %v1259, %v1369
    %v1424 = vadd.f32 %v1261, %v1373
    %v1425 = vadd.f32 %v1358, %v1377
    %v1426 = vadd.f32 %v1263, %v1369
    %v1427 = vadd.f32 %v1265, %v1373
    %v1428 = vadd.f32 %v1361, %v1377
    %v1429 = vpack.c.bf16 %v1384, %v1381
    %v1430 = vpack.c.bf16 %v1385, %v1382
    %v1431 = vpack.c.bf16 %v1386, %v1383
    %v1432 = vpack.c.bf16 %v1390, %v1387
    %v1433 = vpack.c.bf16 %v1391, %v1388
    %v1434 = vpack.c.bf16 %v1392, %v1389
    %v1435 = vpack.c.bf16 %v1396, %v1393
    %v1436 = vpack.c.bf16 %v1397, %v1394
    %v1437 = vpack.c.bf16 %v1398, %v1395
    %v1438 = vpack.c.bf16 %v1402, %v1399
    %v1439 = vpack.c.bf16 %v1403, %v1400
    %v1440 = vpack.c.bf16 %v1404, %v1401
    %v1441 = vpack.c.bf16 %v1408, %v1405
    %v1442 = vpack.c.bf16 %v1409, %v1406
    %v1443 = vpack.c.bf16 %v1410, %v1407
    %v1444 = vpack.c.bf16 %v1414, %v1411
    %v1445 = vpack.c.bf16 %v1415, %v1412
    %v1446 = vpack.c.bf16 %v1416, %v1413
    %v1447 = vpack.c.bf16 %v1420, %v1417
    %v1448 = vpack.c.bf16 %v1421, %v1418
    %v1449 = vpack.c.bf16 %v1422, %v1419
    %v1450 = vpack.c.bf16 %v1426, %v1423
    %v1451 = vpack.c.bf16 %v1427, %v1424
    %v1452 = vpack.c.bf16 %v1428, %v1425
    %v1477 = vunpack.c.l.b16 %v1429
    %v1478 = vunpack.c.l.b16 %v1430
    %v1479 = vunpack.c.l.b16 %v1431
    %v1480 = vunpack.c.h.b16 %v1429
    %v1481 = vunpack.c.h.b16 %v1430
    %v1482 = vunpack.c.h.b16 %v1431
    %v1483 = vunpack.c.l.b16 %v1432
    %v1484 = vunpack.c.l.b16 %v1433
    %v1485 = vunpack.c.l.b16 %v1434
    %v1486 = vunpack.c.h.b16 %v1432
    %v1487 = vunpack.c.h.b16 %v1433
    %v1488 = vunpack.c.h.b16 %v1434
    %v1489 = vunpack.c.l.b16 %v1435
    %v1490 = vunpack.c.l.b16 %v1436
    %v1491 = vunpack.c.l.b16 %v1437
    %v1492 = vunpack.c.h.b16 %v1435
    %v1493 = vunpack.c.h.b16 %v1436
    %v1494 = vunpack.c.h.b16 %v1437
    %v1495 = vunpack.c.l.b16 %v1438
    %v1496 = vunpack.c.l.b16 %v1439
    %v1497 = vunpack.c.l.b16 %v1440
    %v1498 = vunpack.c.h.b16 %v1438
    %v1499 = vunpack.c.h.b16 %v1439
    %v1500 = vunpack.c.h.b16 %v1440
    %v1501 = vunpack.c.l.b16 %v1441
    %v1502 = vunpack.c.l.b16 %v1442
    %v1503 = vunpack.c.l.b16 %v1443
    %v1504 = vunpack.c.h.b16 %v1441
    %v1505 = vunpack.c.h.b16 %v1442
    %v1506 = vunpack.c.h.b16 %v1443
    %v1507 = vunpack.c.l.b16 %v1444
    %v1508 = vunpack.c.l.b16 %v1445
    %v1509 = vunpack.c.l.b16 %v1446
    %v1510 = vunpack.c.h.b16 %v1444
    %v1511 = vunpack.c.h.b16 %v1445
    %v1512 = vunpack.c.h.b16 %v1446
    %v1513 = vunpack.c.l.b16 %v1447
    %v1514 = vunpack.c.l.b16 %v1448
    %v1515 = vunpack.c.l.b16 %v1449
    %v1516 = vunpack.c.h.b16 %v1447
    %v1517 = vunpack.c.h.b16 %v1448
    %v1518 = vunpack.c.h.b16 %v1449
    %v1519 = vunpack.c.l.b16 %v1450
    %v1520 = vunpack.c.l.b16 %v1451
    %v1521 = vunpack.c.l.b16 %v1452
    %v1522 = vunpack.c.h.b16 %v1450
    %v1523 = vunpack.c.h.b16 %v1451
    %v1524 = vunpack.c.h.b16 %v1452
    %v1525 = vpack.c.b16 %v1478, %v1477
    %v1526 = vpack.c.b16 %v1479, %v1479
    %v1527 = vpack.c.b16 %v1481, %v1480
    %v1528 = vpack.c.b16 %v1482, %v1482
    %v1529 = vpack.c.b16 %v1484, %v1483
    %v1530 = vpack.c.b16 %v1485, %v1485
    %v1531 = vpack.c.b16 %v1487, %v1486
    %v1532 = vpack.c.b16 %v1488, %v1488
    %v1533 = vpack.c.b16 %v1490, %v1489
    %v1534 = vpack.c.b16 %v1491, %v1491
    %v1535 = vpack.c.b16 %v1493, %v1492
    %v1536 = vpack.c.b16 %v1494, %v1494
    %v1537 = vpack.c.b16 %v1496, %v1495
    %v1538 = vpack.c.b16 %v1497, %v1497
    %v1539 = vpack.c.b16 %v1499, %v1498
    %v1540 = vpack.c.b16 %v1500, %v1500
    %v1541 = vpack.c.b16 %v1502, %v1501
    %v1542 = vpack.c.b16 %v1503, %v1503
    %v1543 = vpack.c.b16 %v1505, %v1504
    %v1544 = vpack.c.b16 %v1506, %v1506
    %v1545 = vpack.c.b16 %v1508, %v1507
    %v1546 = vpack.c.b16 %v1509, %v1509
    %v1547 = vpack.c.b16 %v1511, %v1510
    %v1548 = vpack.c.b16 %v1512, %v1512
    %v1549 = vpack.c.b16 %v1514, %v1513
    %v1550 = vpack.c.b16 %v1515, %v1515
    %v1551 = vpack.c.b16 %v1517, %v1516
    %v1552 = vpack.c.b16 %v1518, %v1518
    %v1553 = vpack.c.b16 %v1520, %v1519
    %v1554 = vpack.c.b16 %v1521, %v1521
    %v1555 = vpack.c.b16 %v1523, %v1522
    %v1556 = vpack.c.b16 %v1524, %v1524
    %1589 = vst [vmem:[#allocation5] sm:$0xff] %v1525
    %1590 = vst [vmem:[#allocation5 + $0x8] sm:$0xf] %v1526
    %1591 = vst [vmem:[#allocation5 + $0xc] sm:$0xff] %v1527
    %1592 = vst [vmem:[#allocation5 + $0x14] sm:$0xf] %v1528
    %1593 = vst [vmem:[#allocation5 + $0x18] sm:$0xff] %v1529
    %1594 = vst [vmem:[#allocation5 + $0x20] sm:$0xf] %v1530
    %1595 = vst [vmem:[#allocation5 + $0x24] sm:$0xff] %v1531
    %1596 = vst [vmem:[#allocation5 + $0x2c] sm:$0xf] %v1532
    %1597 = vst [vmem:[#allocation5 + $0x30] sm:$0xff] %v1533
    %1598 = vst [vmem:[#allocation5 + $0x38] sm:$0xf] %v1534
    %1599 = vst [vmem:[#allocation5 + $0x3c] sm:$0xff] %v1535
    %1600 = vst [vmem:[#allocation5 + $0x44] sm:$0xf] %v1536
    %1601 = vst [vmem:[#allocation5 + $0x48] sm:$0xff] %v1537
    %1602 = vst [vmem:[#allocation5 + $0x50] sm:$0xf] %v1538
    %1603 = vst [vmem:[#allocation5 + $0x54] sm:$0xff] %v1539
    %1604 = vst [vmem:[#allocation5 + $0x5c] sm:$0xf] %v1540
    %1605 = vst [vmem:[#allocation5 + $0x60] sm:$0xff] %v1541
    %1606 = vst [vmem:[#allocation5 + $0x68] sm:$0xf] %v1542
    %1607 = vst [vmem:[#allocation5 + $0x6c] sm:$0xff] %v1543
    %1608 = vst [vmem:[#allocation5 + $0x74] sm:$0xf] %v1544
    %1609 = vst [vmem:[#allocation5 + $0x78] sm:$0xff] %v1545
    %1610 = vst [vmem:[#allocation5 + $0x80] sm:$0xf] %v1546
    %1611 = vst [vmem:[#allocation5 + $0x84] sm:$0xff] %v1547
    %1612 = vst [vmem:[#allocation5 + $0x8c] sm:$0xf] %v1548
    %1613 = vst [vmem:[#allocation5 + $0x90] sm:$0xff] %v1549
    %1614 = vst [vmem:[#allocation5 + $0x98] sm:$0xf] %v1550
    %1615 = vst [vmem:[#allocation5 + $0x9c] sm:$0xff] %v1551
    %1616 = vst [vmem:[#allocation5 + $0xa4] sm:$0xf] %v1552
    %1617 = vst [vmem:[#allocation5 + $0xa8] sm:$0xff] %v1553
    %1618 = vst [vmem:[#allocation5 + $0xb0] sm:$0xf] %v1554
    %1619 = vst [vmem:[#allocation5 + $0xb4] sm:$0xff] %v1555
    %1620 = vst [vmem:[#allocation5 + $0xbc] sm:$0xf] %v1556
    // Predicated region
    $region26: #{tpu_custom_call.1} parent=1 // pred_check
      _
    $region27: #{tpu_custom_call.1} parent=1 // pred_check_branch
      %1622 = sbr.rel (0) target = $region29
    $region28: #{tpu_custom_call.1} parent=1 // pred_region
      %s1624 = ssub.s32 3072, 3072
      %1625 = vsyncadd [#allocation4], %s1624
      %s1626 = sshll.u32 [#allocation5], 4
      %s1627 = int_to_ptr.vmem [resolvable:$true] %s1626
      %1632 = dma.vmem_to_hbm [thread:$0]  %s1627, 3072, %s5, [#allocation4], 192, 192, 12
    $region29: #{tpu_custom_call.1} parent=1 // pred_fallthru
      _
    // Predicated region
    $region30: #{tpu_custom_call.1} parent=1 // pred_check
      _
    $region31: #{tpu_custom_call.1} parent=1 // pred_check_branch
      %1634 = sbr.rel (0) target = $region33
    $region32: #{tpu_custom_call.1} parent=1 // pred_region
      %1635 = dma.done [#allocation4], 3072
    $region33: #{tpu_custom_call.1} parent=1 // pred_fallthru
      _
    %1636 = vsyncpa [#allocation3], 1
    %1637 = vsyncpa [#allocation4], 1

</llo_original>
